<compile_context>
chip_gen: v7x
topology: tpu7x:2x2x1
jax: 0.10.0
libtpu: 0.0.40
codegen_flags: <defaults>
</compile_context>

<pallas_src>
import math
from functools import partial

import jax
import jax.numpy as jnp
from jax import lax
from jax.experimental import pallas as pl
from jax.experimental.pallas import tpu as pltpu


# ------------------------------ small helpers -------------------------------

def _round_up(x, m):
    return ((x + m - 1) // m) * m


def _pad_rows(x, rows_pad):
    r = x.shape[0]
    if r == rows_pad:
        return x
    return jnp.pad(x, ((0, rows_pad - r), (0, 0)))


def _row_tile(rows, max_tile=256):
    # row-tile: multiple of 8 (sublane), capped so double-buffered tiles stay
    # far below the v7x 64 MiB VMEM budget even for large graphs.
    return min(max_tile, _round_up(rows, 8))


# ---------------------- fused MLP kernel (dot-relu-dot+b) --------------------

def _mlp_kernel(n_layers, x_ref, scale_ref, *rest):
    o_ref = rest[-1]
    wb = rest[:-1]                       # (w1, b1, w2, b2, ...)
    h = x_ref[...]
    for li in range(n_layers):
        w = wb[2 * li][...]
        b = wb[2 * li + 1][...]
        h = jnp.dot(h, w, preferred_element_type=jnp.float32) + b
        if li < n_layers - 1:
            h = jnp.maximum(h, 0.0)      # satbench activation = relu
    o_ref[...] = h * scale_ref[...]      # fused per-row 1/sqrt(deg) pre-scale


def mlp_scaled(params, x, row_scale):
    """out[r,:] = MLP(x[r,:]) * row_scale[r,0] — single fused pallas_call."""
    rows, d_in = x.shape
    d_out = params[-1][0].shape[1]
    tm = _row_tile(rows)
    rows_pad = _round_up(rows, tm)
    n_tiles = rows_pad // tm

    in_specs = [pl.BlockSpec((tm, d_in), lambda i: (i, 0)),
                pl.BlockSpec((tm, 1), lambda i: (i, 0))]
    args = [_pad_rows(x, rows_pad), _pad_rows(row_scale, rows_pad)]
    for (wT, b) in params:
        ki, ko = wT.shape
        in_specs.append(pl.BlockSpec((ki, ko), lambda i: (0, 0)))   # resident
        in_specs.append(pl.BlockSpec((1, ko), lambda i: (0, 0)))
        args.append(wT)
        args.append(b.reshape(1, ko))

    out = pl.pallas_call(
        partial(_mlp_kernel, len(params)),
        out_shape=jax.ShapeDtypeStruct((rows_pad, d_out), jnp.float32),
        grid_spec=pltpu.PrefetchScalarGridSpec(
            num_scalar_prefetch=0,
            grid=(n_tiles,),
            in_specs=in_specs,
            out_specs=pl.BlockSpec((tm, d_out), lambda i: (i, 0))),
        compiler_params=pltpu.CompilerParams(
            dimension_semantics=("parallel",)),
    )(*args)
    return out[:rows]


# ------------------ fused concat + Linear update kernel ----------------------

def _update_kernel(n_in, *refs):
    xs = refs[:n_in]
    scale = refs[n_in]                   # per-row post-scale of the aggregate
    ws = refs[n_in + 1: 2 * n_in + 1]
    b = refs[2 * n_in + 1]
    o = refs[2 * n_in + 2]
    acc = jnp.dot(xs[0][...], ws[0][...], preferred_element_type=jnp.float32)
    acc = acc + jnp.dot(xs[1][...] * scale[...], ws[1][...],
                        preferred_element_type=jnp.float32)
    for k in range(2, n_in):
        acc = acc + jnp.dot(xs[k][...], ws[k][...],
                            preferred_element_type=jnp.float32)
    o[...] = acc + b[...]


def update_linear(xs, aggr_scale, w_splits, b):
    """y = xs[0]@W0 + (xs[1]*scale)@W1 [+ xs[2]@W2] + b  (concat fused away)."""
    rows = xs[0].shape[0]
    d_out = w_splits[0].shape[1]
    tm = _row_tile(rows)
    rows_pad = _round_up(rows, tm)
    n_tiles = rows_pad // tm
    n_in = len(xs)

    in_specs, args = [], []
    for x in xs:
        in_specs.append(pl.BlockSpec((tm, x.shape[1]), lambda i: (i, 0)))
        args.append(_pad_rows(x, rows_pad))
    in_specs.append(pl.BlockSpec((tm, 1), lambda i: (i, 0)))
    args.append(_pad_rows(aggr_scale, rows_pad))
    for w in w_splits:
        ki, ko = w.shape
        in_specs.append(pl.BlockSpec((ki, ko), lambda i: (0, 0)))
        args.append(w)
    in_specs.append(pl.BlockSpec((1, d_out), lambda i: (0, 0)))
    args.append(b.reshape(1, d_out))

    out = pl.pallas_call(
        partial(_update_kernel, n_in),
        out_shape=jax.ShapeDtypeStruct((rows_pad, d_out), jnp.float32),
        grid_spec=pltpu.PrefetchScalarGridSpec(
            num_scalar_prefetch=0,
            grid=(n_tiles,),
            in_specs=in_specs,
            out_specs=pl.BlockSpec((tm, d_out), lambda i: (i, 0))),
        compiler_params=pltpu.CompilerParams(
            dimension_semantics=("parallel",)),
    )(*args)
    return out[:rows]


# ---------------- index-based gather + scatter_sum kernel --------------------

def _gather_scatter_kernel(n_edges, src_ref, dst_ref, feat_ref, out_ref):
    out_ref[...] = jnp.zeros_like(out_ref)

    def body(e, carry):
        s = src_ref[e]                                   # SMEM scalar reads
        d = dst_ref[e]
        out_ref[pl.ds(d, 1), :] = (out_ref[pl.ds(d, 1), :]
                                   + feat_ref[pl.ds(s, 1), :])
        return carry

    lax.fori_loop(0, n_edges, body, 0)


def gather_scatter_sum(feat, src_idx, dst_idx, n_dst):
    """out[n,:] = sum_{e: dst_idx[e]==n} feat[src_idx[e], :]  (O(E*D))."""
    n_src, d = feat.shape
    n_edges = src_idx.shape[0]
    return pl.pallas_call(
        partial(_gather_scatter_kernel, n_edges),
        out_shape=jax.ShapeDtypeStruct((n_dst, d), jnp.float32),
        grid_spec=pltpu.PrefetchScalarGridSpec(
            num_scalar_prefetch=2,                       # src / dst -> SMEM
            grid=(1,),
            in_specs=[pl.BlockSpec((n_src, d), lambda i, s, t: (0, 0))],
            out_specs=pl.BlockSpec((n_dst, d), lambda i, s, t: (0, 0))),
        compiler_params=pltpu.CompilerParams(
            dimension_semantics=("arbitrary",)),
    )(src_idx.astype(jnp.int32), dst_idx.astype(jnp.int32), feat)


# --------------------------- parameters / model ------------------------------

def init_linear(key, in_dim, out_dim):
    k1, k2 = jax.random.split(key)
    bound = 1.0 / math.sqrt(in_dim)
    w = jax.random.uniform(k1, (out_dim, in_dim), jnp.float32, -bound, bound)
    b = jax.random.uniform(k2, (out_dim,), jnp.float32, -bound, bound)
    return w.T, b  # store W^T so kernels do x @ W^T + b


def init_mlp(key, n_layers, in_dim, hidden_dim, out_dim):
    keys = jax.random.split(key, max(n_layers, 1))
    params = []
    if n_layers == 1:
        params.append(init_linear(keys[0], in_dim, out_dim))
    else:
        params.append(init_linear(keys[0], in_dim, hidden_dim))
        for i in range(1, n_layers - 1):
            params.append(init_linear(keys[i], hidden_dim, hidden_dim))
        params.append(init_linear(keys[-1], hidden_dim, out_dim))
    return params


def init_gcn_lcg(key, dim, n_mlp_layers):
    k = jax.random.split(key, 5)
    return {
        "l2c": init_mlp(k[0], n_mlp_layers, dim, dim, dim),
        "c2l": init_mlp(k[1], n_mlp_layers, dim, dim, dim),
        "l2l": init_mlp(k[2], n_mlp_layers, dim, dim, dim),
        "c_update": init_linear(k[3], dim * 2, dim),
        "l_update": init_linear(k[4], dim * 3, dim),
    }


def _split_rows(wT, sizes):
    outs, off = [], 0
    for s in sizes:
        outs.append(wT[off:off + s])
        off += s
    return outs


@partial(jax.jit, static_argnums=(1, 2, 7))
def gcn_lcg_forward(params, l_size, c_size, l_edge_index, c_edge_index,
                    l_emb, c_emb, n_iterations):
    E = l_edge_index.shape[0]
    D = l_emb.shape[1]
    le = l_edge_index.astype(jnp.int32)
    ce = c_edge_index.astype(jnp.int32)

    # Degrees: tiny, loop-invariant -> plain JAX, computed once.
    ones_e = jnp.ones((E,), jnp.float32)
    l_deg = jax.ops.segment_sum(ones_e, le, num_segments=l_size)
    c_deg = jax.ops.segment_sum(ones_e, ce, num_segments=c_size)
    # degree_norm[e] = sqrt(l_deg[le[e]]) * sqrt(c_deg[ce[e]]) is factored into
    # a per-source pre-scale (fused into the message MLP) and a per-destination
    # post-scale (fused into the update Linear) — no per-edge divide remains.
    inv_sqrt_l = jnp.where(l_deg > 0, lax.rsqrt(l_deg), 0.0).reshape(l_size, 1)
    inv_sqrt_c = jnp.where(c_deg > 0, lax.rsqrt(c_deg), 0.0).reshape(c_size, 1)
    ones_l = jnp.ones((l_size, 1), jnp.float32)

    wc_splits = _split_rows(params["c_update"][0], [D, D])
    bc = params["c_update"][1]
    wl_splits = _split_rows(params["l_update"][0], [D, D, D])
    bl = params["l_update"][1]

    l_embs, c_embs = [l_emb], [c_emb]
    for _ in range(n_iterations):
        # messages (fused 2-layer MLPs; output pre-scaled by 1/sqrt(src deg))
        l_msg = mlp_scaled(params["l2c"], l_emb, inv_sqrt_l)           # (L, D)
        c_msg = mlp_scaled(params["c2l"], c_emb, inv_sqrt_c)           # (C, D)

        # pos/neg literal swap: pure layout shuffle, kept as JAX glue
        pair = l_emb.reshape(l_size // 2, 2 * D)
        l2l_in = jnp.concatenate([pair[:, D:], pair[:, :D]],
                                 axis=1).reshape(l_size, D)
        l2l_msg = mlp_scaled(params["l2l"], l2l_in, ones_l)            # (L, D)

        # index-based gather + scatter_sum (no one-hot matmuls)
        l2c_raw = gather_scatter_sum(l_msg, le, ce, c_size)            # (C, D)
        c_emb = update_linear([c_emb, l2c_raw], inv_sqrt_c, wc_splits, bc)
        c_embs.append(c_emb)

        c2l_raw = gather_scatter_sum(c_msg, ce, le, l_size)            # (L, D)
        l_emb = update_linear([l_emb, c2l_raw, l2l_msg], inv_sqrt_l,
                              wl_splits, bl)
        l_embs.append(l_emb)

    return l_embs, c_embs


# ------------------------------ pure-JAX reference ---------------------------

def _ref_mlp(params, x):
    n = len(params)
    for i, (wT, b) in enumerate(params):
        x = x @ wT + b
        if i < n - 1:
            x = jnp.maximum(x, 0.0)
    return x


def reference_forward(params, l_size, c_size, l_edge_index, c_edge_index,
                      l_emb, c_emb, n_iterations):
    E = l_edge_index.shape[0]
    D = l_emb.shape[1]
    ones_e = jnp.ones((E, 1), jnp.float32)
    l_deg = jax.ops.segment_sum(ones_e, l_edge_index, num_segments=l_size)
    c_deg = jax.ops.segment_sum(ones_e, c_edge_index, num_segments=c_size)
    degree_norm = jnp.sqrt(l_deg[l_edge_index]) * jnp.sqrt(c_deg[c_edge_index])

    l_embs, c_embs = [l_emb], [c_emb]
    for _ in range(n_iterations):
        l2c_msg = _ref_mlp(params["l2c"], l_emb)[l_edge_index]
        c2l_msg = _ref_mlp(params["c2l"], c_emb)[c_edge_index]
        pair = l_emb.reshape(l_size // 2, 2 * D)
        l2l_in = jnp.concatenate([pair[:, D:], pair[:, :D]],
                                 axis=1).reshape(l_size, D)
        l2l_msg = _ref_mlp(params["l2l"], l2l_in)

        l2c_aggr = jax.ops.segment_sum(l2c_msg / degree_norm, c_edge_index,
                                       num_segments=c_size)
        wT_c, b_c = params["c_update"]
        c_emb = jnp.concatenate([c_emb, l2c_aggr], axis=1) @ wT_c + b_c
        c_embs.append(c_emb)

        c2l_aggr = jax.ops.segment_sum(c2l_msg / degree_norm, l_edge_index,
                                       num_segments=l_size)
        wT_l, b_l = params["l_update"]
        l_emb = jnp.concatenate([l_emb, c2l_aggr, l2l_msg], axis=1) @ wT_l + b_l
        l_embs.append(l_emb)
    return l_embs, c_embs


# ----------------------------------- main ------------------------------------

if __name__ == "__main__":
    # small opts: dim=32, n_mlp_layers=2, n_iterations=2, relu activation
    DIM = 32
    N_MLP_LAYERS = 2
    N_ITERATIONS = 2
    L_SIZE = 8          # number of literals (even: pos/neg pairs)
    C_SIZE = 6          # number of clauses
    N_EDGES = 16

    key = jax.random.PRNGKey(0)
    k_par, k_le, k_ce, k_lemb, k_cemb = jax.random.split(key, 5)

    params = init_gcn_lcg(k_par, DIM, N_MLP_LAYERS)
    l_edge_index = jax.random.randint(k_le, (N_EDGES,), 0, L_SIZE, dtype=jnp.int32)
    c_edge_index = jax.random.randint(k_ce, (N_EDGES,), 0, C_SIZE, dtype=jnp.int32)
    l_emb = jax.random.normal(k_lemb, (L_SIZE, DIM), jnp.float32)
    c_emb = jax.random.normal(k_cemb, (C_SIZE, DIM), jnp.float32)

    l_embs, c_embs = gcn_lcg_forward(params, L_SIZE, C_SIZE,
                                     l_edge_index, c_edge_index,
                                     l_emb, c_emb, N_ITERATIONS)
    jax.block_until_ready(l_embs[-1])
    jax.block_until_ready(c_embs[-1])

    # correctness check against pure-JAX reference
    l_ref, c_ref = reference_forward(params, L_SIZE, C_SIZE,
                                     l_edge_index, c_edge_index,
                                     l_emb, c_emb, N_ITERATIONS)
    assert len(l_embs) == N_ITERATIONS + 1 and len(c_embs) == N_ITERATIONS + 1
    for a, b in zip(l_embs, l_ref):
        assert jnp.allclose(a, b, atol=1e-3, rtol=1e-3), "literal emb mismatch"
    for a, b in zip(c_embs, c_ref):
        assert jnp.allclose(a, b, atol=1e-3, rtol=1e-3), "clause emb mismatch"

    print("KERNEL_OK")
</pallas_src>

<mosaic_0001>
module attributes {stable_mosaic.version = 11 : i64} {
  func.func private @main(%arg0: i32) attributes {dimension_semantics = [#tpu.dimension_semantics<core_parallel>], iteration_bounds = array<i64: 2>, tpu.core_type = #tpu.core_type<sc_scalar_subcore>, window_params = []} {
    return
  }
}

module attributes {stable_mosaic.version = 11 : i64} {
  func.func private @main(%arg0: i32) attributes {dimension_semantics = [#tpu.dimension_semantics<core_parallel>], iteration_bounds = array<i64: 2>, tpu.core_type = #tpu.core_type<sc_scalar_subcore>, window_params = []} {
    return
  }
}

module attributes {stable_mosaic.version = 11 : i64} {
  func.func @_mlp_kernel(%arg0: i32, %arg1: memref<8x32xf32, #tpu.memory_space<vmem>>, %arg2: memref<8x1xf32, #tpu.memory_space<vmem>>, %arg3: memref<32x32xf32, #tpu.memory_space<vmem>>, %arg4: memref<1x32xf32, #tpu.memory_space<vmem>>, %arg5: memref<32x32xf32, #tpu.memory_space<vmem>>, %arg6: memref<1x32xf32, #tpu.memory_space<vmem>>, %arg7: memref<8x32xf32, #tpu.memory_space<vmem>>) attributes {dimension_semantics = [#tpu.dimension_semantics<parallel>], iteration_bounds = array<i64: 1>, scalar_prefetch = 0 : i64, scratch_operands = 0 : i64, tpu.core_type = #tpu.core_type<tc>, window_params = [{transform_indices = @transform_0, window_bounds = array<i64: 8, 32>}, {transform_indices = @transform_1, window_bounds = array<i64: 8, 1>}, {pipeline_mode = #tpu.pipeline_mode<synchronous>, transform_indices = @transform_2, window_bounds = array<i64: 32, 32>}, {pipeline_mode = #tpu.pipeline_mode<synchronous>, transform_indices = @transform_3, window_bounds = array<i64: 1, 32>}, {pipeline_mode = #tpu.pipeline_mode<synchronous>, transform_indices = @transform_4, window_bounds = array<i64: 32, 32>}, {pipeline_mode = #tpu.pipeline_mode<synchronous>, transform_indices = @transform_5, window_bounds = array<i64: 1, 32>}, {transform_indices = @transform_6, window_bounds = array<i64: 8, 32>}]} {
    %c0 = arith.constant 0 : index
    %c0_0 = arith.constant 0 : index
    %0 = vector.load %arg1[%c0, %c0_0] : memref<8x32xf32, #tpu.memory_space<vmem>>, vector<8x32xf32>
    %c0_1 = arith.constant 0 : index
    %c0_2 = arith.constant 0 : index
    %1 = vector.load %arg3[%c0_1, %c0_2] : memref<32x32xf32, #tpu.memory_space<vmem>>, vector<32x32xf32>
    %c0_3 = arith.constant 0 : index
    %c0_4 = arith.constant 0 : index
    %2 = vector.load %arg4[%c0_3, %c0_4] : memref<1x32xf32, #tpu.memory_space<vmem>>, vector<1x32xf32>
    %cst = arith.constant dense<0.000000e+00> : vector<8x32xf32>
    %3 = tpu.matmul %0, %1, %cst {dimension_numbers = #tpu.dot_dimension_numbers<[1], [0], [0], [1], [0, 0, 1, 1], [], []>} : vector<8x32xf32>, vector<32x32xf32>, vector<8x32xf32> -> vector<8x32xf32>
    %4 = vector.broadcast %2 : vector<1x32xf32> to vector<8x32xf32>
    %5 = arith.addf %3, %4 : vector<8x32xf32>
    %cst_5 = arith.constant 0.000000e+00 : f32
    %6 = vector.broadcast %cst_5 : f32 to vector<8x32xf32>
    %7 = arith.maximumf %5, %6 : vector<8x32xf32>
    %c0_6 = arith.constant 0 : index
    %c0_7 = arith.constant 0 : index
    %8 = vector.load %arg5[%c0_6, %c0_7] : memref<32x32xf32, #tpu.memory_space<vmem>>, vector<32x32xf32>
    %c0_8 = arith.constant 0 : index
    %c0_9 = arith.constant 0 : index
    %9 = vector.load %arg6[%c0_8, %c0_9] : memref<1x32xf32, #tpu.memory_space<vmem>>, vector<1x32xf32>
    %cst_10 = arith.constant dense<0.000000e+00> : vector<8x32xf32>
    %10 = tpu.matmul %7, %8, %cst_10 {dimension_numbers = #tpu.dot_dimension_numbers<[1], [0], [0], [1], [0, 0, 1, 1], [], []>} : vector<8x32xf32>, vector<32x32xf32>, vector<8x32xf32> -> vector<8x32xf32>
    %11 = vector.broadcast %9 : vector<1x32xf32> to vector<8x32xf32>
    %12 = arith.addf %10, %11 : vector<8x32xf32>
    %c0_11 = arith.constant 0 : index
    %c0_12 = arith.constant 0 : index
    %13 = vector.load %arg2[%c0_11, %c0_12] : memref<8x1xf32, #tpu.memory_space<vmem>>, vector<8x1xf32>
    %14 = vector.broadcast %13 : vector<8x1xf32> to vector<8x32xf32>
    %15 = arith.mulf %12, %14 : vector<8x32xf32>
    %c0_13 = arith.constant 0 : index
    %c0_14 = arith.constant 0 : index
    %16 = vector.load %arg7[%c0_13, %c0_14] : memref<8x32xf32, #tpu.memory_space<vmem>>, vector<8x32xf32>
    tpu.vector_store %arg7[%c0_13, %c0_14], %15 {strides = array<i32>} : memref<8x32xf32, #tpu.memory_space<vmem>>, vector<8x32xf32>,
    return
  }
  func.func @transform_0(%arg0: i32) -> (i32, i32) {
    %c0_i32 = arith.constant 0 : i32
    %c0_i32_0 = arith.constant 0 : i32
    return %arg0, %c0_i32 : i32, i32
  }
  func.func @transform_1(%arg0: i32) -> (i32, i32) {
    %c0_i32 = arith.constant 0 : i32
    %c0_i32_0 = arith.constant 0 : i32
    return %arg0, %c0_i32 : i32, i32
  }
  func.func @transform_2(%arg0: i32) -> (i32, i32) {
    %c0_i32 = arith.constant 0 : i32
    %c0_i32_0 = arith.constant 0 : i32
    %c0_i32_1 = arith.constant 0 : i32
    return %c0_i32, %c0_i32_0 : i32, i32
  }
  func.func @transform_3(%arg0: i32) -> (i32, i32) {
    %c0_i32 = arith.constant 0 : i32
    %c0_i32_0 = arith.constant 0 : i32
    %c0_i32_1 = arith.constant 0 : i32
    return %c0_i32, %c0_i32_0 : i32, i32
  }
  func.func @transform_4(%arg0: i32) -> (i32, i32) {
    %c0_i32 = arith.constant 0 : i32
    %c0_i32_0 = arith.constant 0 : i32
    %c0_i32_1 = arith.constant 0 : i32
    return %c0_i32, %c0_i32_0 : i32, i32
  }
  func.func @transform_5(%arg0: i32) -> (i32, i32) {
    %c0_i32 = arith.constant 0 : i32
    %c0_i32_0 = arith.constant 0 : i32
    %c0_i32_1 = arith.constant 0 : i32
    return %c0_i32, %c0_i32_0 : i32, i32
  }
  func.func @transform_6(%arg0: i32) -> (i32, i32) {
    %c0_i32 = arith.constant 0 : i32
    %c0_i32_0 = arith.constant 0 : i32
    return %arg0, %c0_i32 : i32, i32
  }
}

module attributes {stable_mosaic.version = 11 : i64} {
  func.func @_gather_scatter_kernel(%arg0: i32, %arg1: memref<16xi32, #tpu.memory_space<smem>>, %arg2: memref<16xi32, #tpu.memory_space<smem>>, %arg3: memref<6x32xf32, #tpu.memory_space<vmem>>, %arg4: memref<8x32xf32, #tpu.memory_space<vmem>>) attributes {dimension_semantics = [#tpu.dimension_semantics<arbitrary>], iteration_bounds = array<i64: 1>, scalar_prefetch = 2 : i64, scratch_operands = 0 : i64, tpu.core_type = #tpu.core_type<tc>, window_params = [{pipeline_mode = #tpu.pipeline_mode<synchronous>, transform_indices = @transform_0, window_bounds = array<i64: 6, 32>}, {pipeline_mode = #tpu.pipeline_mode<synchronous>, transform_indices = @transform_1, window_bounds = array<i64: 8, 32>}]} {
    %cst = arith.constant 0.000000e+00 : f32
    %0 = vector.broadcast %cst : f32 to vector<8x32xf32>
    %c0 = arith.constant 0 : index
    %c0_0 = arith.constant 0 : index
    %1 = vector.load %arg4[%c0, %c0_0] : memref<8x32xf32, #tpu.memory_space<vmem>>, vector<8x32xf32>
    tpu.vector_store %arg4[%c0, %c0_0], %0 {strides = array<i32>} : memref<8x32xf32, #tpu.memory_space<vmem>>, vector<8x32xf32>,
    %c0_i32 = arith.constant 0 : i32
    %c16_i32 = arith.constant 16 : i32
    %2 = arith.addi %c0_i32, %c16_i32 : i32
    %c1_i32 = arith.constant 1 : i32
    scf.for %arg5 = %c0_i32 to %2 step %c1_i32  : i32 {
      %3 = arith.index_cast %arg5 : i32 to index
      %4 = memref.load %arg1[%3] : memref<16xi32, #tpu.memory_space<smem>>
      %5 = arith.index_cast %arg5 : i32 to index
      %6 = memref.load %arg2[%5] : memref<16xi32, #tpu.memory_space<smem>>
      %7 = arith.index_cast %6 : i32 to index
      %c0_2 = arith.constant 0 : index
      %8 = vector.load %arg4[%7, %c0_2] : memref<8x32xf32, #tpu.memory_space<vmem>>, vector<1x32xf32>
      %9 = arith.index_cast %4 : i32 to index
      %c0_3 = arith.constant 0 : index
      %10 = vector.load %arg3[%9, %c0_3] : memref<6x32xf32, #tpu.memory_space<vmem>>, vector<1x32xf32>
      %11 = arith.addf %8, %10 : vector<1x32xf32>
      %12 = arith.index_cast %6 : i32 to index
      %c0_4 = arith.constant 0 : index
      %13 = vector.load %arg4[%12, %c0_4] : memref<8x32xf32, #tpu.memory_space<vmem>>, vector<1x32xf32>
      tpu.vector_store %arg4[%12, %c0_4], %11 {strides = array<i32>} : memref<8x32xf32, #tpu.memory_space<vmem>>, vector<1x32xf32>,
    }
    %c16_i32_1 = arith.constant 16 : i32
    return
  }
  func.func @transform_0(%arg0: i32, %arg1: memref<16xi32, #tpu.memory_space<smem>>, %arg2: memref<16xi32, #tpu.memory_space<smem>>) -> (i32, i32) {
    %c0_i32 = arith.constant 0 : i32
    %c0_i32_0 = arith.constant 0 : i32
    %c0_i32_1 = arith.constant 0 : i32
    return %c0_i32, %c0_i32_0 : i32, i32
  }
  func.func @transform_1(%arg0: i32, %arg1: memref<16xi32, #tpu.memory_space<smem>>, %arg2: memref<16xi32, #tpu.memory_space<smem>>) -> (i32, i32) {
    %c0_i32 = arith.constant 0 : i32
    %c0_i32_0 = arith.constant 0 : i32
    %c0_i32_1 = arith.constant 0 : i32
    return %c0_i32, %c0_i32_0 : i32, i32
  }
}

module attributes {stable_mosaic.version = 11 : i64} {
  func.func @_update_kernel(%arg0: i32, %arg1: memref<8x32xf32, #tpu.memory_space<vmem>>, %arg2: memref<8x32xf32, #tpu.memory_space<vmem>>, %arg3: memref<8x32xf32, #tpu.memory_space<vmem>>, %arg4: memref<8x1xf32, #tpu.memory_space<vmem>>, %arg5: memref<32x32xf32, #tpu.memory_space<vmem>>, %arg6: memref<32x32xf32, #tpu.memory_space<vmem>>, %arg7: memref<32x32xf32, #tpu.memory_space<vmem>>, %arg8: memref<1x32xf32, #tpu.memory_space<vmem>>, %arg9: memref<8x32xf32, #tpu.memory_space<vmem>>) attributes {dimension_semantics = [#tpu.dimension_semantics<parallel>], iteration_bounds = array<i64: 1>, scalar_prefetch = 0 : i64, scratch_operands = 0 : i64, tpu.core_type = #tpu.core_type<tc>, window_params = [{transform_indices = @transform_0, window_bounds = array<i64: 8, 32>}, {transform_indices = @transform_1, window_bounds = array<i64: 8, 32>}, {transform_indices = @transform_2, window_bounds = array<i64: 8, 32>}, {transform_indices = @transform_3, window_bounds = array<i64: 8, 1>}, {pipeline_mode = #tpu.pipeline_mode<synchronous>, transform_indices = @transform_4, window_bounds = array<i64: 32, 32>}, {pipeline_mode = #tpu.pipeline_mode<synchronous>, transform_indices = @transform_5, window_bounds = array<i64: 32, 32>}, {pipeline_mode = #tpu.pipeline_mode<synchronous>, transform_indices = @transform_6, window_bounds = array<i64: 32, 32>}, {pipeline_mode = #tpu.pipeline_mode<synchronous>, transform_indices = @transform_7, window_bounds = array<i64: 1, 32>}, {transform_indices = @transform_8, window_bounds = array<i64: 8, 32>}]} {
    %c0 = arith.constant 0 : index
    %c0_0 = arith.constant 0 : index
    %0 = vector.load %arg1[%c0, %c0_0] : memref<8x32xf32, #tpu.memory_space<vmem>>, vector<8x32xf32>
    %c0_1 = arith.constant 0 : index
    %c0_2 = arith.constant 0 : index
    %1 = vector.load %arg5[%c0_1, %c0_2] : memref<32x32xf32, #tpu.memory_space<vmem>>, vector<32x32xf32>
    %cst = arith.constant dense<0.000000e+00> : vector<8x32xf32>
    %2 = tpu.matmul %0, %1, %cst {dimension_numbers = #tpu.dot_dimension_numbers<[1], [0], [0], [1], [0, 0, 1, 1], [], []>} : vector<8x32xf32>, vector<32x32xf32>, vector<8x32xf32> -> vector<8x32xf32>
    %c0_3 = arith.constant 0 : index
    %c0_4 = arith.constant 0 : index
    %3 = vector.load %arg2[%c0_3, %c0_4] : memref<8x32xf32, #tpu.memory_space<vmem>>, vector<8x32xf32>
    %c0_5 = arith.constant 0 : index
    %c0_6 = arith.constant 0 : index
    %4 = vector.load %arg4[%c0_5, %c0_6] : memref<8x1xf32, #tpu.memory_space<vmem>>, vector<8x1xf32>
    %5 = vector.broadcast %4 : vector<8x1xf32> to vector<8x32xf32>
    %6 = arith.mulf %3, %5 : vector<8x32xf32>
    %c0_7 = arith.constant 0 : index
    %c0_8 = arith.constant 0 : index
    %7 = vector.load %arg6[%c0_7, %c0_8] : memref<32x32xf32, #tpu.memory_space<vmem>>, vector<32x32xf32>
    %cst_9 = arith.constant dense<0.000000e+00> : vector<8x32xf32>
    %8 = tpu.matmul %6, %7, %cst_9 {dimension_numbers = #tpu.dot_dimension_numbers<[1], [0], [0], [1], [0, 0, 1, 1], [], []>} : vector<8x32xf32>, vector<32x32xf32>, vector<8x32xf32> -> vector<8x32xf32>
    %9 = arith.addf %2, %8 : vector<8x32xf32>
    %c0_10 = arith.constant 0 : index
    %c0_11 = arith.constant 0 : index
    %10 = vector.load %arg3[%c0_10, %c0_11] : memref<8x32xf32, #tpu.memory_space<vmem>>, vector<8x32xf32>
    %c0_12 = arith.constant 0 : index
    %c0_13 = arith.constant 0 : index
    %11 = vector.load %arg7[%c0_12, %c0_13] : memref<32x32xf32, #tpu.memory_space<vmem>>, vector<32x32xf32>
    %cst_14 = arith.constant dense<0.000000e+00> : vector<8x32xf32>
    %12 = tpu.matmul %10, %11, %cst_14 {dimension_numbers = #tpu.dot_dimension_numbers<[1], [0], [0], [1], [0, 0, 1, 1], [], []>} : vector<8x32xf32>, vector<32x32xf32>, vector<8x32xf32> -> vector<8x32xf32>
    %13 = arith.addf %9, %12 : vector<8x32xf32>
    %c0_15 = arith.constant 0 : index
    %c0_16 = arith.constant 0 : index
    %14 = vector.load %arg8[%c0_15, %c0_16] : memref<1x32xf32, #tpu.memory_space<vmem>>, vector<1x32xf32>
    %15 = vector.broadcast %14 : vector<1x32xf32> to vector<8x32xf32>
    %16 = arith.addf %13, %15 : vector<8x32xf32>
    %c0_17 = arith.constant 0 : index
    %c0_18 = arith.constant 0 : index
    %17 = vector.load %arg9[%c0_17, %c0_18] : memref<8x32xf32, #tpu.memory_space<vmem>>, vector<8x32xf32>
    tpu.vector_store %arg9[%c0_17, %c0_18], %16 {strides = array<i32>} : memref<8x32xf32, #tpu.memory_space<vmem>>, vector<8x32xf32>,
    return
  }
  func.func @transform_0(%arg0: i32) -> (i32, i32) {
    %c0_i32 = arith.constant 0 : i32
    %c0_i32_0 = arith.constant 0 : i32
    return %arg0, %c0_i32 : i32, i32
  }
  func.func @transform_1(%arg0: i32) -> (i32, i32) {
    %c0_i32 = arith.constant 0 : i32
    %c0_i32_0 = arith.constant 0 : i32
    return %arg0, %c0_i32 : i32, i32
  }
  func.func @transform_2(%arg0: i32) -> (i32, i32) {
    %c0_i32 = arith.constant 0 : i32
    %c0_i32_0 = arith.constant 0 : i32
    return %arg0, %c0_i32 : i32, i32
  }
  func.func @transform_3(%arg0: i32) -> (i32, i32) {
    %c0_i32 = arith.constant 0 : i32
    %c0_i32_0 = arith.constant 0 : i32
    return %arg0, %c0_i32 : i32, i32
  }
  func.func @transform_4(%arg0: i32) -> (i32, i32) {
    %c0_i32 = arith.constant 0 : i32
    %c0_i32_0 = arith.constant 0 : i32
    %c0_i32_1 = arith.constant 0 : i32
    return %c0_i32, %c0_i32_0 : i32, i32
  }
  func.func @transform_5(%arg0: i32) -> (i32, i32) {
    %c0_i32 = arith.constant 0 : i32
    %c0_i32_0 = arith.constant 0 : i32
    %c0_i32_1 = arith.constant 0 : i32
    return %c0_i32, %c0_i32_0 : i32, i32
  }
  func.func @transform_6(%arg0: i32) -> (i32, i32) {
    %c0_i32 = arith.constant 0 : i32
    %c0_i32_0 = arith.constant 0 : i32
    %c0_i32_1 = arith.constant 0 : i32
    return %c0_i32, %c0_i32_0 : i32, i32
  }
  func.func @transform_7(%arg0: i32) -> (i32, i32) {
    %c0_i32 = arith.constant 0 : i32
    %c0_i32_0 = arith.constant 0 : i32
    %c0_i32_1 = arith.constant 0 : i32
    return %c0_i32, %c0_i32_0 : i32, i32
  }
  func.func @transform_8(%arg0: i32) -> (i32, i32) {
    %c0_i32 = arith.constant 0 : i32
    %c0_i32_0 = arith.constant 0 : i32
    return %arg0, %c0_i32 : i32, i32
  }
}

module attributes {stable_mosaic.version = 11 : i64} {
  func.func @_gather_scatter_kernel(%arg0: i32, %arg1: memref<16xi32, #tpu.memory_space<smem>>, %arg2: memref<16xi32, #tpu.memory_space<smem>>, %arg3: memref<8x32xf32, #tpu.memory_space<vmem>>, %arg4: memref<6x32xf32, #tpu.memory_space<vmem>>) attributes {dimension_semantics = [#tpu.dimension_semantics<arbitrary>], iteration_bounds = array<i64: 1>, scalar_prefetch = 2 : i64, scratch_operands = 0 : i64, tpu.core_type = #tpu.core_type<tc>, window_params = [{pipeline_mode = #tpu.pipeline_mode<synchronous>, transform_indices = @transform_0, window_bounds = array<i64: 8, 32>}, {pipeline_mode = #tpu.pipeline_mode<synchronous>, transform_indices = @transform_1, window_bounds = array<i64: 6, 32>}]} {
    %cst = arith.constant 0.000000e+00 : f32
    %0 = vector.broadcast %cst : f32 to vector<6x32xf32>
    %c0 = arith.constant 0 : index
    %c0_0 = arith.constant 0 : index
    %1 = vector.load %arg4[%c0, %c0_0] : memref<6x32xf32, #tpu.memory_space<vmem>>, vector<6x32xf32>
    tpu.vector_store %arg4[%c0, %c0_0], %0 {strides = array<i32>} : memref<6x32xf32, #tpu.memory_space<vmem>>, vector<6x32xf32>,
    %c0_i32 = arith.constant 0 : i32
    %c16_i32 = arith.constant 16 : i32
    %2 = arith.addi %c0_i32, %c16_i32 : i32
    %c1_i32 = arith.constant 1 : i32
    scf.for %arg5 = %c0_i32 to %2 step %c1_i32  : i32 {
      %3 = arith.index_cast %arg5 : i32 to index
      %4 = memref.load %arg1[%3] : memref<16xi32, #tpu.memory_space<smem>>
      %5 = arith.index_cast %arg5 : i32 to index
      %6 = memref.load %arg2[%5] : memref<16xi32, #tpu.memory_space<smem>>
      %7 = arith.index_cast %6 : i32 to index
      %c0_2 = arith.constant 0 : index
      %8 = vector.load %arg4[%7, %c0_2] : memref<6x32xf32, #tpu.memory_space<vmem>>, vector<1x32xf32>
      %9 = arith.index_cast %4 : i32 to index
      %c0_3 = arith.constant 0 : index
      %10 = vector.load %arg3[%9, %c0_3] : memref<8x32xf32, #tpu.memory_space<vmem>>, vector<1x32xf32>
      %11 = arith.addf %8, %10 : vector<1x32xf32>
      %12 = arith.index_cast %6 : i32 to index
      %c0_4 = arith.constant 0 : index
      %13 = vector.load %arg4[%12, %c0_4] : memref<6x32xf32, #tpu.memory_space<vmem>>, vector<1x32xf32>
      tpu.vector_store %arg4[%12, %c0_4], %11 {strides = array<i32>} : memref<6x32xf32, #tpu.memory_space<vmem>>, vector<1x32xf32>,
    }
    %c16_i32_1 = arith.constant 16 : i32
    return
  }
  func.func @transform_0(%arg0: i32, %arg1: memref<16xi32, #tpu.memory_space<smem>>, %arg2: memref<16xi32, #tpu.memory_space<smem>>) -> (i32, i32) {
    %c0_i32 = arith.constant 0 : i32
    %c0_i32_0 = arith.constant 0 : i32
    %c0_i32_1 = arith.constant 0 : i32
    return %c0_i32, %c0_i32_0 : i32, i32
  }
  func.func @transform_1(%arg0: i32, %arg1: memref<16xi32, #tpu.memory_space<smem>>, %arg2: memref<16xi32, #tpu.memory_space<smem>>) -> (i32, i32) {
    %c0_i32 = arith.constant 0 : i32
    %c0_i32_0 = arith.constant 0 : i32
    %c0_i32_1 = arith.constant 0 : i32
    return %c0_i32, %c0_i32_0 : i32, i32
  }
}

module attributes {stable_mosaic.version = 11 : i64} {
  func.func @_update_kernel(%arg0: i32, %arg1: memref<8x32xf32, #tpu.memory_space<vmem>>, %arg2: memref<8x32xf32, #tpu.memory_space<vmem>>, %arg3: memref<8x1xf32, #tpu.memory_space<vmem>>, %arg4: memref<32x32xf32, #tpu.memory_space<vmem>>, %arg5: memref<32x32xf32, #tpu.memory_space<vmem>>, %arg6: memref<1x32xf32, #tpu.memory_space<vmem>>, %arg7: memref<8x32xf32, #tpu.memory_space<vmem>>) attributes {dimension_semantics = [#tpu.dimension_semantics<parallel>], iteration_bounds = array<i64: 1>, scalar_prefetch = 0 : i64, scratch_operands = 0 : i64, tpu.core_type = #tpu.core_type<tc>, window_params = [{transform_indices = @transform_0, window_bounds = array<i64: 8, 32>}, {transform_indices = @transform_1, window_bounds = array<i64: 8, 32>}, {transform_indices = @transform_2, window_bounds = array<i64: 8, 1>}, {pipeline_mode = #tpu.pipeline_mode<synchronous>, transform_indices = @transform_3, window_bounds = array<i64: 32, 32>}, {pipeline_mode = #tpu.pipeline_mode<synchronous>, transform_indices = @transform_4, window_bounds = array<i64: 32, 32>}, {pipeline_mode = #tpu.pipeline_mode<synchronous>, transform_indices = @transform_5, window_bounds = array<i64: 1, 32>}, {transform_indices = @transform_6, window_bounds = array<i64: 8, 32>}]} {
    %c0 = arith.constant 0 : index
    %c0_0 = arith.constant 0 : index
    %0 = vector.load %arg1[%c0, %c0_0] : memref<8x32xf32, #tpu.memory_space<vmem>>, vector<8x32xf32>
    %c0_1 = arith.constant 0 : index
    %c0_2 = arith.constant 0 : index
    %1 = vector.load %arg4[%c0_1, %c0_2] : memref<32x32xf32, #tpu.memory_space<vmem>>, vector<32x32xf32>
    %cst = arith.constant dense<0.000000e+00> : vector<8x32xf32>
    %2 = tpu.matmul %0, %1, %cst {dimension_numbers = #tpu.dot_dimension_numbers<[1], [0], [0], [1], [0, 0, 1, 1], [], []>} : vector<8x32xf32>, vector<32x32xf32>, vector<8x32xf32> -> vector<8x32xf32>
    %c0_3 = arith.constant 0 : index
    %c0_4 = arith.constant 0 : index
    %3 = vector.load %arg2[%c0_3, %c0_4] : memref<8x32xf32, #tpu.memory_space<vmem>>, vector<8x32xf32>
    %c0_5 = arith.constant 0 : index
    %c0_6 = arith.constant 0 : index
    %4 = vector.load %arg3[%c0_5, %c0_6] : memref<8x1xf32, #tpu.memory_space<vmem>>, vector<8x1xf32>
    %5 = vector.broadcast %4 : vector<8x1xf32> to vector<8x32xf32>
    %6 = arith.mulf %3, %5 : vector<8x32xf32>
    %c0_7 = arith.constant 0 : index
    %c0_8 = arith.constant 0 : index
    %7 = vector.load %arg5[%c0_7, %c0_8] : memref<32x32xf32, #tpu.memory_space<vmem>>, vector<32x32xf32>
    %cst_9 = arith.constant dense<0.000000e+00> : vector<8x32xf32>
    %8 = tpu.matmul %6, %7, %cst_9 {dimension_numbers = #tpu.dot_dimension_numbers<[1], [0], [0], [1], [0, 0, 1, 1], [], []>} : vector<8x32xf32>, vector<32x32xf32>, vector<8x32xf32> -> vector<8x32xf32>
    %9 = arith.addf %2, %8 : vector<8x32xf32>
    %c0_10 = arith.constant 0 : index
    %c0_11 = arith.constant 0 : index
    %10 = vector.load %arg6[%c0_10, %c0_11] : memref<1x32xf32, #tpu.memory_space<vmem>>, vector<1x32xf32>
    %11 = vector.broadcast %10 : vector<1x32xf32> to vector<8x32xf32>
    %12 = arith.addf %9, %11 : vector<8x32xf32>
    %c0_12 = arith.constant 0 : index
    %c0_13 = arith.constant 0 : index
    %13 = vector.load %arg7[%c0_12, %c0_13] : memref<8x32xf32, #tpu.memory_space<vmem>>, vector<8x32xf32>
    tpu.vector_store %arg7[%c0_12, %c0_13], %12 {strides = array<i32>} : memref<8x32xf32, #tpu.memory_space<vmem>>, vector<8x32xf32>,
    return
  }
  func.func @transform_0(%arg0: i32) -> (i32, i32) {
    %c0_i32 = arith.constant 0 : i32
    %c0_i32_0 = arith.constant 0 : i32
    return %arg0, %c0_i32 : i32, i32
  }
  func.func @transform_1(%arg0: i32) -> (i32, i32) {
    %c0_i32 = arith.constant 0 : i32
    %c0_i32_0 = arith.constant 0 : i32
    return %arg0, %c0_i32 : i32, i32
  }
  func.func @transform_2(%arg0: i32) -> (i32, i32) {
    %c0_i32 = arith.constant 0 : i32
    %c0_i32_0 = arith.constant 0 : i32
    return %arg0, %c0_i32 : i32, i32
  }
  func.func @transform_3(%arg0: i32) -> (i32, i32) {
    %c0_i32 = arith.constant 0 : i32
    %c0_i32_0 = arith.constant 0 : i32
    %c0_i32_1 = arith.constant 0 : i32
    return %c0_i32, %c0_i32_0 : i32, i32
  }
  func.func @transform_4(%arg0: i32) -> (i32, i32) {
    %c0_i32 = arith.constant 0 : i32
    %c0_i32_0 = arith.constant 0 : i32
    %c0_i32_1 = arith.constant 0 : i32
    return %c0_i32, %c0_i32_0 : i32, i32
  }
  func.func @transform_5(%arg0: i32) -> (i32, i32) {
    %c0_i32 = arith.constant 0 : i32
    %c0_i32_0 = arith.constant 0 : i32
    %c0_i32_1 = arith.constant 0 : i32
    return %c0_i32, %c0_i32_0 : i32, i32
  }
  func.func @transform_6(%arg0: i32) -> (i32, i32) {
    %c0_i32 = arith.constant 0 : i32
    %c0_i32_0 = arith.constant 0 : i32
    return %arg0, %c0_i32 : i32, i32
  }
}

module attributes {stable_mosaic.version = 11 : i64} {
  func.func @_update_kernel(%arg0: i32, %arg1: memref<8x32xf32, #tpu.memory_space<vmem>>, %arg2: memref<8x32xf32, #tpu.memory_space<vmem>>, %arg3: memref<8x32xf32, #tpu.memory_space<vmem>>, %arg4: memref<8x1xf32, #tpu.memory_space<vmem>>, %arg5: memref<32x32xf32, #tpu.memory_space<vmem>>, %arg6: memref<32x32xf32, #tpu.memory_space<vmem>>, %arg7: memref<32x32xf32, #tpu.memory_space<vmem>>, %arg8: memref<1x32xf32, #tpu.memory_space<vmem>>, %arg9: memref<8x32xf32, #tpu.memory_space<vmem>>) attributes {dimension_semantics = [#tpu.dimension_semantics<parallel>], iteration_bounds = array<i64: 1>, scalar_prefetch = 0 : i64, scratch_operands = 0 : i64, tpu.core_type = #tpu.core_type<tc>, window_params = [{transform_indices = @transform_0, window_bounds = array<i64: 8, 32>}, {transform_indices = @transform_1, window_bounds = array<i64: 8, 32>}, {transform_indices = @transform_2, window_bounds = array<i64: 8, 32>}, {transform_indices = @transform_3, window_bounds = array<i64: 8, 1>}, {pipeline_mode = #tpu.pipeline_mode<synchronous>, transform_indices = @transform_4, window_bounds = array<i64: 32, 32>}, {pipeline_mode = #tpu.pipeline_mode<synchronous>, transform_indices = @transform_5, window_bounds = array<i64: 32, 32>}, {pipeline_mode = #tpu.pipeline_mode<synchronous>, transform_indices = @transform_6, window_bounds = array<i64: 32, 32>}, {pipeline_mode = #tpu.pipeline_mode<synchronous>, transform_indices = @transform_7, window_bounds = array<i64: 1, 32>}, {transform_indices = @transform_8, window_bounds = array<i64: 8, 32>}]} {
    %c0 = arith.constant 0 : index
    %c0_0 = arith.constant 0 : index
    %0 = vector.load %arg1[%c0, %c0_0] : memref<8x32xf32, #tpu.memory_space<vmem>>, vector<8x32xf32>
    %c0_1 = arith.constant 0 : index
    %c0_2 = arith.constant 0 : index
    %1 = vector.load %arg5[%c0_1, %c0_2] : memref<32x32xf32, #tpu.memory_space<vmem>>, vector<32x32xf32>
    %cst = arith.constant dense<0.000000e+00> : vector<8x32xf32>
    %2 = tpu.matmul %0, %1, %cst {dimension_numbers = #tpu.dot_dimension_numbers<[1], [0], [0], [1], [0, 0, 1, 1], [], []>} : vector<8x32xf32>, vector<32x32xf32>, vector<8x32xf32> -> vector<8x32xf32>
    %c0_3 = arith.constant 0 : index
    %c0_4 = arith.constant 0 : index
    %3 = vector.load %arg2[%c0_3, %c0_4] : memref<8x32xf32, #tpu.memory_space<vmem>>, vector<8x32xf32>
    %c0_5 = arith.constant 0 : index
    %c0_6 = arith.constant 0 : index
    %4 = vector.load %arg4[%c0_5, %c0_6] : memref<8x1xf32, #tpu.memory_space<vmem>>, vector<8x1xf32>
    %5 = vector.broadcast %4 : vector<8x1xf32> to vector<8x32xf32>
    %6 = arith.mulf %3, %5 : vector<8x32xf32>
    %c0_7 = arith.constant 0 : index
    %c0_8 = arith.constant 0 : index
    %7 = vector.load %arg6[%c0_7, %c0_8] : memref<32x32xf32, #tpu.memory_space<vmem>>, vector<32x32xf32>
    %cst_9 = arith.constant dense<0.000000e+00> : vector<8x32xf32>
    %8 = tpu.matmul %6, %7, %cst_9 {dimension_numbers = #tpu.dot_dimension_numbers<[1], [0], [0], [1], [0, 0, 1, 1], [], []>} : vector<8x32xf32>, vector<32x32xf32>, vector<8x32xf32> -> vector<8x32xf32>
    %9 = arith.addf %2, %8 : vector<8x32xf32>
    %c0_10 = arith.constant 0 : index
    %c0_11 = arith.constant 0 : index
    %10 = vector.load %arg3[%c0_10, %c0_11] : memref<8x32xf32, #tpu.memory_space<vmem>>, vector<8x32xf32>
    %c0_12 = arith.constant 0 : index
    %c0_13 = arith.constant 0 : index
    %11 = vector.load %arg7[%c0_12, %c0_13] : memref<32x32xf32, #tpu.memory_space<vmem>>, vector<32x32xf32>
    %cst_14 = arith.constant dense<0.000000e+00> : vector<8x32xf32>
    %12 = tpu.matmul %10, %11, %cst_14 {dimension_numbers = #tpu.dot_dimension_numbers<[1], [0], [0], [1], [0, 0, 1, 1], [], []>} : vector<8x32xf32>, vector<32x32xf32>, vector<8x32xf32> -> vector<8x32xf32>
    %13 = arith.addf %9, %12 : vector<8x32xf32>
    %c0_15 = arith.constant 0 : index
    %c0_16 = arith.constant 0 : index
    %14 = vector.load %arg8[%c0_15, %c0_16] : memref<1x32xf32, #tpu.memory_space<vmem>>, vector<1x32xf32>
    %15 = vector.broadcast %14 : vector<1x32xf32> to vector<8x32xf32>
    %16 = arith.addf %13, %15 : vector<8x32xf32>
    %c0_17 = arith.constant 0 : index
    %c0_18 = arith.constant 0 : index
    %17 = vector.load %arg9[%c0_17, %c0_18] : memref<8x32xf32, #tpu.memory_space<vmem>>, vector<8x32xf32>
    tpu.vector_store %arg9[%c0_17, %c0_18], %16 {strides = array<i32>} : memref<8x32xf32, #tpu.memory_space<vmem>>, vector<8x32xf32>,
    return
  }
  func.func @transform_0(%arg0: i32) -> (i32, i32) {
    %c0_i32 = arith.constant 0 : i32
    %c0_i32_0 = arith.constant 0 : i32
    return %arg0, %c0_i32 : i32, i32
  }
  func.func @transform_1(%arg0: i32) -> (i32, i32) {
    %c0_i32 = arith.constant 0 : i32
    %c0_i32_0 = arith.constant 0 : i32
    return %arg0, %c0_i32 : i32, i32
  }
  func.func @transform_2(%arg0: i32) -> (i32, i32) {
    %c0_i32 = arith.constant 0 : i32
    %c0_i32_0 = arith.constant 0 : i32
    return %arg0, %c0_i32 : i32, i32
  }
  func.func @transform_3(%arg0: i32) -> (i32, i32) {
    %c0_i32 = arith.constant 0 : i32
    %c0_i32_0 = arith.constant 0 : i32
    return %arg0, %c0_i32 : i32, i32
  }
  func.func @transform_4(%arg0: i32) -> (i32, i32) {
    %c0_i32 = arith.constant 0 : i32
    %c0_i32_0 = arith.constant 0 : i32
    %c0_i32_1 = arith.constant 0 : i32
    return %c0_i32, %c0_i32_0 : i32, i32
  }
  func.func @transform_5(%arg0: i32) -> (i32, i32) {
    %c0_i32 = arith.constant 0 : i32
    %c0_i32_0 = arith.constant 0 : i32
    %c0_i32_1 = arith.constant 0 : i32
    return %c0_i32, %c0_i32_0 : i32, i32
  }
  func.func @transform_6(%arg0: i32) -> (i32, i32) {
    %c0_i32 = arith.constant 0 : i32
    %c0_i32_0 = arith.constant 0 : i32
    %c0_i32_1 = arith.constant 0 : i32
    return %c0_i32, %c0_i32_0 : i32, i32
  }
  func.func @transform_7(%arg0: i32) -> (i32, i32) {
    %c0_i32 = arith.constant 0 : i32
    %c0_i32_0 = arith.constant 0 : i32
    %c0_i32_1 = arith.constant 0 : i32
    return %c0_i32, %c0_i32_0 : i32, i32
  }
  func.func @transform_8(%arg0: i32) -> (i32, i32) {
    %c0_i32 = arith.constant 0 : i32
    %c0_i32_0 = arith.constant 0 : i32
    return %arg0, %c0_i32 : i32, i32
  }
}

module attributes {stable_mosaic.version = 11 : i64} {
  func.func @_update_kernel(%arg0: i32, %arg1: memref<8x32xf32, #tpu.memory_space<vmem>>, %arg2: memref<8x32xf32, #tpu.memory_space<vmem>>, %arg3: memref<8x1xf32, #tpu.memory_space<vmem>>, %arg4: memref<32x32xf32, #tpu.memory_space<vmem>>, %arg5: memref<32x32xf32, #tpu.memory_space<vmem>>, %arg6: memref<1x32xf32, #tpu.memory_space<vmem>>, %arg7: memref<8x32xf32, #tpu.memory_space<vmem>>) attributes {dimension_semantics = [#tpu.dimension_semantics<parallel>], iteration_bounds = array<i64: 1>, scalar_prefetch = 0 : i64, scratch_operands = 0 : i64, tpu.core_type = #tpu.core_type<tc>, window_params = [{transform_indices = @transform_0, window_bounds = array<i64: 8, 32>}, {transform_indices = @transform_1, window_bounds = array<i64: 8, 32>}, {transform_indices = @transform_2, window_bounds = array<i64: 8, 1>}, {pipeline_mode = #tpu.pipeline_mode<synchronous>, transform_indices = @transform_3, window_bounds = array<i64: 32, 32>}, {pipeline_mode = #tpu.pipeline_mode<synchronous>, transform_indices = @transform_4, window_bounds = array<i64: 32, 32>}, {pipeline_mode = #tpu.pipeline_mode<synchronous>, transform_indices = @transform_5, window_bounds = array<i64: 1, 32>}, {transform_indices = @transform_6, window_bounds = array<i64: 8, 32>}]} {
    %c0 = arith.constant 0 : index
    %c0_0 = arith.constant 0 : index
    %0 = vector.load %arg1[%c0, %c0_0] : memref<8x32xf32, #tpu.memory_space<vmem>>, vector<8x32xf32>
    %c0_1 = arith.constant 0 : index
    %c0_2 = arith.constant 0 : index
    %1 = vector.load %arg4[%c0_1, %c0_2] : memref<32x32xf32, #tpu.memory_space<vmem>>, vector<32x32xf32>
    %cst = arith.constant dense<0.000000e+00> : vector<8x32xf32>
    %2 = tpu.matmul %0, %1, %cst {dimension_numbers = #tpu.dot_dimension_numbers<[1], [0], [0], [1], [0, 0, 1, 1], [], []>} : vector<8x32xf32>, vector<32x32xf32>, vector<8x32xf32> -> vector<8x32xf32>
    %c0_3 = arith.constant 0 : index
    %c0_4 = arith.constant 0 : index
    %3 = vector.load %arg2[%c0_3, %c0_4] : memref<8x32xf32, #tpu.memory_space<vmem>>, vector<8x32xf32>
    %c0_5 = arith.constant 0 : index
    %c0_6 = arith.constant 0 : index
    %4 = vector.load %arg3[%c0_5, %c0_6] : memref<8x1xf32, #tpu.memory_space<vmem>>, vector<8x1xf32>
    %5 = vector.broadcast %4 : vector<8x1xf32> to vector<8x32xf32>
    %6 = arith.mulf %3, %5 : vector<8x32xf32>
    %c0_7 = arith.constant 0 : index
    %c0_8 = arith.constant 0 : index
    %7 = vector.load %arg5[%c0_7, %c0_8] : memref<32x32xf32, #tpu.memory_space<vmem>>, vector<32x32xf32>
    %cst_9 = arith.constant dense<0.000000e+00> : vector<8x32xf32>
    %8 = tpu.matmul %6, %7, %cst_9 {dimension_numbers = #tpu.dot_dimension_numbers<[1], [0], [0], [1], [0, 0, 1, 1], [], []>} : vector<8x32xf32>, vector<32x32xf32>, vector<8x32xf32> -> vector<8x32xf32>
    %9 = arith.addf %2, %8 : vector<8x32xf32>
    %c0_10 = arith.constant 0 : index
    %c0_11 = arith.constant 0 : index
    %10 = vector.load %arg6[%c0_10, %c0_11] : memref<1x32xf32, #tpu.memory_space<vmem>>, vector<1x32xf32>
    %11 = vector.broadcast %10 : vector<1x32xf32> to vector<8x32xf32>
    %12 = arith.addf %9, %11 : vector<8x32xf32>
    %c0_12 = arith.constant 0 : index
    %c0_13 = arith.constant 0 : index
    %13 = vector.load %arg7[%c0_12, %c0_13] : memref<8x32xf32, #tpu.memory_space<vmem>>, vector<8x32xf32>
    tpu.vector_store %arg7[%c0_12, %c0_13], %12 {strides = array<i32>} : memref<8x32xf32, #tpu.memory_space<vmem>>, vector<8x32xf32>,
    return
  }
  func.func @transform_0(%arg0: i32) -> (i32, i32) {
    %c0_i32 = arith.constant 0 : i32
    %c0_i32_0 = arith.constant 0 : i32
    return %arg0, %c0_i32 : i32, i32
  }
  func.func @transform_1(%arg0: i32) -> (i32, i32) {
    %c0_i32 = arith.constant 0 : i32
    %c0_i32_0 = arith.constant 0 : i32
    return %arg0, %c0_i32 : i32, i32
  }
  func.func @transform_2(%arg0: i32) -> (i32, i32) {
    %c0_i32 = arith.constant 0 : i32
    %c0_i32_0 = arith.constant 0 : i32
    return %arg0, %c0_i32 : i32, i32
  }
  func.func @transform_3(%arg0: i32) -> (i32, i32) {
    %c0_i32 = arith.constant 0 : i32
    %c0_i32_0 = arith.constant 0 : i32
    %c0_i32_1 = arith.constant 0 : i32
    return %c0_i32, %c0_i32_0 : i32, i32
  }
  func.func @transform_4(%arg0: i32) -> (i32, i32) {
    %c0_i32 = arith.constant 0 : i32
    %c0_i32_0 = arith.constant 0 : i32
    %c0_i32_1 = arith.constant 0 : i32
    return %c0_i32, %c0_i32_0 : i32, i32
  }
  func.func @transform_5(%arg0: i32) -> (i32, i32) {
    %c0_i32 = arith.constant 0 : i32
    %c0_i32_0 = arith.constant 0 : i32
    %c0_i32_1 = arith.constant 0 : i32
    return %c0_i32, %c0_i32_0 : i32, i32
  }
  func.func @transform_6(%arg0: i32) -> (i32, i32) {
    %c0_i32 = arith.constant 0 : i32
    %c0_i32_0 = arith.constant 0 : i32
    return %arg0, %c0_i32 : i32, i32
  }
}

</mosaic_0001>

<llo_original>
// kernel: gcn_lcg_forward.19
$region0: #{gcn_lcg_forward.19}
  #allocation0 [shape = 'u32[]', space=smem, size = 0x4, offset = 0x4, fixed_abs, tag = 'smem constant byte address 0x4 - core index']
  #allocation1 [shape = 'u32[144,128]{1,0:T(1,128)}', space=vmem, size = 0x12000, scoped, tag = 'internal scratch']
  #allocation2 [shape = 's32[1]{0}', space=sflag, size = 0x4, scoped, tag = 'scoped memory for gcn_lcg_forward.19']
  #allocation3 [shape = 'u8[512]{0}', space=smem, size = 0x200, scoped, tag = 'prefetched SMEM operand 0']
  #allocation4 [shape = 'u8[512]{0}', space=smem, size = 0x200, scoped, tag = 'prefetched SMEM operand 1']
  %s0 = inlined_call_operand.vmem [shape: s32[16], index: 0, kind: input, shape index: {}]
  %s1 = inlined_call_operand.vmem [shape: s32[16], index: 1, kind: input, shape index: {}]
  %s2 = inlined_call_operand.vmem [shape: f32[6,32], index: 2, kind: input, shape index: {}]
  %s3 = inlined_call_operand.vmem [shape: f32[8,32], index: 3, kind: output, shape index: {}]
  %s4 = sld [smem:[#allocation0]]
  $region21: #{gcn_lcg_forward.19} parent=0
    _
  %s6 = ssub.s32 1, %s4
  %s7 = scalar_select 0, %s6, %s4
  %s8 = sshll.u32 %s0, 4
  %s9 = int_to_ptr.vmem [resolvable:$true] %s8
  %11 = dma.vmem_to_smem %s9, 16, [#allocation3], [#allocation2]
  %s12 = sshll.u32 %s1, 4
  %s13 = int_to_ptr.vmem [resolvable:$true] %s12
  %15 = dma.vmem_to_smem %s13, 16, [#allocation4], [#allocation2]
  %16 = dma.done [#allocation2], 32
  %17 = sfence
  // Predicated region
  $region2: #{gcn_lcg_forward.19} parent=0 // pred_check
    _
  $region3: #{gcn_lcg_forward.19} parent=0 // pred_check_branch
    %19 = sbr.rel (0) target = $region5
  $region4: #{gcn_lcg_forward.19} parent=0 // pred_region
    _
  $region5: #{gcn_lcg_forward.19} parent=0 // pred_fallthru
    _
  %vm20 = vcmask 261120
  %21 = vst.msk [vmem:[%s3] sm:$0xff] %vm20, 0.0
  loop: start=0, step=1, limit=16
  $region6: #{gcn_lcg_forward.19} parent=0 // loop_pre_header
    _
  $region7: #{gcn_lcg_forward.19} parent=0 // loop_header
    %s23 = sphi 0, %s27
    %p24 = scmp.ge.s32.totalorder %s23, 16
  $region8: #{gcn_lcg_forward.19} parent=0 // loop_header_branch
    %26 = sbr.rel (%p24) target = $region12
  $region9: #{gcn_lcg_forward.19} parent=0 // loop_body
    %s28 = sld [smem:[#allocation3 + %s23]]
    %s29 = sld [smem:[#allocation4 + %s23]]
    %s30 = scalar_lea.vmem %s3, %s29
    %v31 = vld [vmem:[%s30] sm:$0x1]
    %s32 = scalar_lea.vmem %s2, %s28
    %v33 = vld [vmem:[%s32] sm:$0x1]
    %v34 = vadd.f32 %v31, %v33
    %vm35 = vcmask 253952
    %36 = vst.msk [vmem:[%s30] sm:$0x1] %vm35, %v34
  $region10: #{gcn_lcg_forward.19} parent=0 // loop_footer
    %s27 = sadd.s32 1, %s23
  $region11: #{gcn_lcg_forward.19} parent=0 // loop_footer_branch
    %22 = sbr.rel target = $region7
  $region12: #{gcn_lcg_forward.19} parent=0 // loop_exit
    _
  // Predicated region
  $region13: #{gcn_lcg_forward.19} parent=0 // pred_check
    _
  $region14: #{gcn_lcg_forward.19} parent=0 // pred_check_branch
    %38 = sbr.rel (0) target = $region16
  $region15: #{gcn_lcg_forward.19} parent=0 // pred_region
    _
  $region16: #{gcn_lcg_forward.19} parent=0 // pred_fallthru
    _
  // Predicated region
  $region17: #{gcn_lcg_forward.19} parent=0 // pred_check
    _
  $region18: #{gcn_lcg_forward.19} parent=0 // pred_check_branch
    %40 = sbr.rel (0) target = $region20
  $region19: #{gcn_lcg_forward.19} parent=0 // pred_region
    _
  $region20: #{gcn_lcg_forward.19} parent=0 // pred_fallthru
    _

// kernel: gcn_lcg_forward.16
$region0: #{gcn_lcg_forward.16}
  #allocation0 [shape = 'u32[]', space=smem, size = 0x4, offset = 0x4, fixed_abs, tag = 'smem constant byte address 0x4 - core index']
  #allocation1 [shape = 'u32[144,128]{1,0:T(1,128)}', space=vmem, size = 0x12000, scoped, tag = 'internal scratch']
  %s0 = inlined_call_operand.vmem [shape: f32[8,32], index: 0, kind: input, shape index: {}]
  %s1 = inlined_call_operand.vmem [shape: f32[8,1], index: 1, kind: input, shape index: {}]
  %s2 = inlined_call_operand.vmem [shape: f32[32,32], index: 2, kind: input, shape index: {}]
  %s3 = inlined_call_operand.vmem [shape: f32[1,32], index: 3, kind: input, shape index: {}]
  %s4 = inlined_call_operand.vmem [shape: f32[32,32], index: 4, kind: input, shape index: {}]
  %s5 = inlined_call_operand.vmem [shape: f32[1,32], index: 5, kind: input, shape index: {}]
  %s6 = inlined_call_operand.vmem [shape: f32[8,32], index: 6, kind: output, shape index: {}]
  %s7 = sld [smem:[#allocation0]]
  $region34: #{gcn_lcg_forward.16} parent=0
    _
  %s9 = ssub.s32 1, %s7
  %s10 = scalar_select 0, %s9, %s7
  // Predicated region
  $region2: #{gcn_lcg_forward.16} parent=0 // pred_check
    _
  $region3: #{gcn_lcg_forward.16} parent=0 // pred_check_branch
    %12 = sbr.rel (0) target = $region5
  $region4: #{gcn_lcg_forward.16} parent=0 // pred_region
    _
  $region5: #{gcn_lcg_forward.16} parent=0 // pred_fallthru
    _
  // Predicated region
  $region6: #{gcn_lcg_forward.16} parent=0 // pred_check
    _
  $region7: #{gcn_lcg_forward.16} parent=0 // pred_check_branch
    %14 = sbr.rel (0) target = $region9
  $region8: #{gcn_lcg_forward.16} parent=0 // pred_region
    _
  $region9: #{gcn_lcg_forward.16} parent=0 // pred_fallthru
    _
  // Predicated region
  $region10: #{gcn_lcg_forward.16} parent=0 // pred_check
    _
  $region11: #{gcn_lcg_forward.16} parent=0 // pred_check_branch
    %16 = sbr.rel (0) target = $region13
  $region12: #{gcn_lcg_forward.16} parent=0 // pred_region
    _
  $region13: #{gcn_lcg_forward.16} parent=0 // pred_fallthru
    _
  // Predicated region
  $region14: #{gcn_lcg_forward.16} parent=0 // pred_check
    _
  $region15: #{gcn_lcg_forward.16} parent=0 // pred_check_branch
    %18 = sbr.rel (0) target = $region17
  $region16: #{gcn_lcg_forward.16} parent=0 // pred_region
    _
  $region17: #{gcn_lcg_forward.16} parent=0 // pred_fallthru
    _
  // Predicated region
  $region18: #{gcn_lcg_forward.16} parent=0 // pred_check
    _
  $region19: #{gcn_lcg_forward.16} parent=0 // pred_check_branch
    %20 = sbr.rel (0) target = $region21
  $region20: #{gcn_lcg_forward.16} parent=0 // pred_region
    _
  $region21: #{gcn_lcg_forward.16} parent=0 // pred_fallthru
    _
  // Predicated region
  $region22: #{gcn_lcg_forward.16} parent=0 // pred_check
    _
  $region23: #{gcn_lcg_forward.16} parent=0 // pred_check_branch
    %22 = sbr.rel (0) target = $region25
  $region24: #{gcn_lcg_forward.16} parent=0 // pred_region
    _
  $region25: #{gcn_lcg_forward.16} parent=0 // pred_fallthru
    _
  %v23 = vld [vmem:[%s0] sm:$0xff]
  %v24 = vld [vmem:[%s2] sm:$0xff]
  %v25 = vld [vmem:[%s2 + $0x8] sm:$0xff]
  %v26 = vld [vmem:[%s2 + $0x10] sm:$0xff]
  %v27 = vld [vmem:[%s2 + $0x18] sm:$0xff]
  %v28 = vld [vmem:[%s3] sm:$0x1]
  %v30 = vlaneseq
  %v31 = vshrl.u32 %v30, 7
  %v32 = vsub.s32 0, %v31
  %v33 = vrot.slane %v28, %v32
  %vm35 = vcmask 261120
  %v37 = vsel %vm35, %v23, 0
  %39 = vmatprep.subr.mxu0 0.0
  %40 = vmatpush1.msra.mxu0 %v24
  %41 = vmatprep.subr.mxu0 0.0
  %42 = vmatpush1.msra.mxu0 %v25
  %43 = vmatprep.subr.mxu0 0.0
  %44 = vmatpush1.msra.mxu0 %v26
  %45 = vmatprep.subr.mxu0 0.0
  %46 = vmatpush1.msra.mxu0 %v27
  %47 = vmatprep.subr.mxu0 0.0
  %48 = vmatpush1.msra.mxu0 0.0
  %49 = vmatprep.subr.mxu0 0.0
  %50 = vmatpush1.msra.mxu0 0.0
  %51 = vmatprep.subr.mxu0 0.0
  %52 = vmatpush1.msra.mxu0 0.0
  %53 = vmatprep.subr.mxu0 0.0
  %54 = vmatpush1.msra.mxu0 0.0
  %55 = vmatprep.subr.mxu0 0.0
  %56 = vmatpush1.msra.mxu0 0.0
  %57 = vmatprep.subr.mxu0 0.0
  %58 = vmatpush1.msra.mxu0 0.0
  %59 = vmatprep.subr.mxu0 0.0
  %60 = vmatpush1.msra.mxu0 0.0
  %61 = vmatprep.subr.mxu0 0.0
  %62 = vmatpush1.msra.mxu0 0.0
  %63 = vmatprep.subr.mxu0 0.0
  %64 = vmatpush1.msra.mxu0 0.0
  %65 = vmatprep.subr.mxu0 0.0
  %66 = vmatpush1.msra.mxu0 0.0
  %67 = vmatprep.subr.mxu0 0.0
  %68 = vmatpush1.msra.mxu0 0.0
  %69 = vmatprep.subr.mxu0 0.0
  %70 = vmatpush1.msra.mxu0 0.0
  %71 = vmatprep.subr.mxu0 0.0
  %72 = vmatpush1.msra.mxu0 0.0
  %73 = vmatprep.subr.mxu0 0.0
  %74 = vmatpush1.msra.mxu0 0.0
  %75 = vmatprep.subr.mxu0 0.0
  %76 = vmatpush1.msra.mxu0 0.0
  %77 = vmatprep.subr.mxu0 0.0
  %78 = vmatpush1.msra.mxu0 0.0
  %79 = vmatprep.subr.mxu0 0.0
  %80 = vmatpush1.msra.mxu0 0.0
  %81 = vmatprep.subr.mxu0 0.0
  %82 = vmatpush1.msra.mxu0 0.0
  %83 = vmatprep.subr.mxu0 0.0
  %84 = vmatpush1.msra.mxu0 0.0
  %85 = vmatprep.subr.mxu0 0.0
  %86 = vmatpush1.msra.mxu0 0.0
  %87 = vmatprep.subr.mxu0 0.0
  %88 = vmatpush1.msra.mxu0 0.0
  %89 = vmatprep.subr.mxu0 0.0
  %90 = vmatpush1.msra.mxu0 0.0
  %91 = vmatprep.subr.mxu0 0.0
  %92 = vmatpush1.msra.mxu0 0.0
  %93 = vmatprep.subr.mxu0 0.0
  %94 = vmatpush1.msra.mxu0 0.0
  %95 = vmatprep.subr.mxu0 0.0
  %96 = vmatpush1.msra.mxu0 0.0
  %97 = vmatprep.subr.mxu0 0.0
  %98 = vmatpush1.msra.mxu0 0.0
  %99 = vmatprep.subr.mxu0 0.0
  %100 = vmatpush1.msra.mxu0 0.0
  %101 = vmatprep.subr.mxu0 0.0
  %102 = vmatpush1.msra.mxu0 0.0
  %103 = vmatprep.mubr.f32.mxu0 0.0
  %104 = vmatmul.mubr.f32.gmra.mrb[0].mxu0 %v37
  %v105 = vpop.f32.mrb[0].mxu0
  %v106 = vadd.f32 %v33, %v105
  %v107 = vpop.f32.mrb[0].mxu0
  %108 = vdwg.mxu0
  %v109 = vmax.f32 %v106, 0.0
  %v110 = vld [vmem:[%s4] sm:$0xff]
  %v111 = vld [vmem:[%s4 + $0x8] sm:$0xff]
  %v112 = vld [vmem:[%s4 + $0x10] sm:$0xff]
  %v113 = vld [vmem:[%s4 + $0x18] sm:$0xff]
  %v114 = vld [vmem:[%s5] sm:$0x1]
  %v116 = vlaneseq
  %v117 = vshrl.u32 %v116, 7
  %v118 = vsub.s32 0, %v117
  %v119 = vrot.slane %v114, %v118
  %v122 = vsel %vm35, %v109, 0
  %124 = vmatprep.subr.mxu0 0.0
  %125 = vmatpush1.msra.mxu0 %v110
  %126 = vmatprep.subr.mxu0 0.0
  %127 = vmatpush1.msra.mxu0 %v111
  %128 = vmatprep.subr.mxu0 0.0
  %129 = vmatpush1.msra.mxu0 %v112
  %130 = vmatprep.subr.mxu0 0.0
  %131 = vmatpush1.msra.mxu0 %v113
  %132 = vmatprep.subr.mxu0 0.0
  %133 = vmatpush1.msra.mxu0 0.0
  %134 = vmatprep.subr.mxu0 0.0
  %135 = vmatpush1.msra.mxu0 0.0
  %136 = vmatprep.subr.mxu0 0.0
  %137 = vmatpush1.msra.mxu0 0.0
  %138 = vmatprep.subr.mxu0 0.0
  %139 = vmatpush1.msra.mxu0 0.0
  %140 = vmatprep.subr.mxu0 0.0
  %141 = vmatpush1.msra.mxu0 0.0
  %142 = vmatprep.subr.mxu0 0.0
  %143 = vmatpush1.msra.mxu0 0.0
  %144 = vmatprep.subr.mxu0 0.0
  %145 = vmatpush1.msra.mxu0 0.0
  %146 = vmatprep.subr.mxu0 0.0
  %147 = vmatpush1.msra.mxu0 0.0
  %148 = vmatprep.subr.mxu0 0.0
  %149 = vmatpush1.msra.mxu0 0.0
  %150 = vmatprep.subr.mxu0 0.0
  %151 = vmatpush1.msra.mxu0 0.0
  %152 = vmatprep.subr.mxu0 0.0
  %153 = vmatpush1.msra.mxu0 0.0
  %154 = vmatprep.subr.mxu0 0.0
  %155 = vmatpush1.msra.mxu0 0.0
  %156 = vmatprep.subr.mxu0 0.0
  %157 = vmatpush1.msra.mxu0 0.0
  %158 = vmatprep.subr.mxu0 0.0
  %159 = vmatpush1.msra.mxu0 0.0
  %160 = vmatprep.subr.mxu0 0.0
  %161 = vmatpush1.msra.mxu0 0.0
  %162 = vmatprep.subr.mxu0 0.0
  %163 = vmatpush1.msra.mxu0 0.0
  %164 = vmatprep.subr.mxu0 0.0
  %165 = vmatpush1.msra.mxu0 0.0
  %166 = vmatprep.subr.mxu0 0.0
  %167 = vmatpush1.msra.mxu0 0.0
  %168 = vmatprep.subr.mxu0 0.0
  %169 = vmatpush1.msra.mxu0 0.0
  %170 = vmatprep.subr.mxu0 0.0
  %171 = vmatpush1.msra.mxu0 0.0
  %172 = vmatprep.subr.mxu0 0.0
  %173 = vmatpush1.msra.mxu0 0.0
  %174 = vmatprep.subr.mxu0 0.0
  %175 = vmatpush1.msra.mxu0 0.0
  %176 = vmatprep.subr.mxu0 0.0
  %177 = vmatpush1.msra.mxu0 0.0
  %178 = vmatprep.subr.mxu0 0.0
  %179 = vmatpush1.msra.mxu0 0.0
  %180 = vmatprep.subr.mxu0 0.0
  %181 = vmatpush1.msra.mxu0 0.0
  %182 = vmatprep.subr.mxu0 0.0
  %183 = vmatpush1.msra.mxu0 0.0
  %184 = vmatprep.subr.mxu0 0.0
  %185 = vmatpush1.msra.mxu0 0.0
  %186 = vmatprep.subr.mxu0 0.0
  %187 = vmatpush1.msra.mxu0 0.0
  %188 = vmatprep.mubr.f32.mxu0 0.0
  %189 = vmatmul.mubr.f32.gmra.mrb[0].mxu0 %v122
  %v190 = vpop.f32.mrb[0].mxu0
  %v191 = vadd.f32 %v119, %v190
  %v192 = vpop.f32.mrb[0].mxu0
  %193 = vdwg.mxu0
  %v194 = vld [vmem:[%s1] sm:$0xff]
  %196 = vset.pattern.permute.xlu0 0
  %197 = vperm.xlu0 %196, %v194
  %v198 = vpop.permute.xlu0 %197
  %v200 = vmul.f32 %v191, %v198
  %201 = vst.msk [vmem:[%s6] sm:$0xff] %vm35, %v200
  // Predicated region
  $region26: #{gcn_lcg_forward.16} parent=0 // pred_check
    _
  $region27: #{gcn_lcg_forward.16} parent=0 // pred_check_branch
    %203 = sbr.rel (0) target = $region29
  $region28: #{gcn_lcg_forward.16} parent=0 // pred_region
    _
  $region29: #{gcn_lcg_forward.16} parent=0 // pred_fallthru
    _
  // Predicated region
  $region30: #{gcn_lcg_forward.16} parent=0 // pred_check
    _
  $region31: #{gcn_lcg_forward.16} parent=0 // pred_check_branch
    %205 = sbr.rel (0) target = $region33
  $region32: #{gcn_lcg_forward.16} parent=0 // pred_region
    _
  $region33: #{gcn_lcg_forward.16} parent=0 // pred_fallthru
    _

// kernel: gcn_lcg_forward.20
$region0: #{gcn_lcg_forward.20}
  #allocation0 [shape = 'u32[]', space=smem, size = 0x4, offset = 0x4, fixed_abs, tag = 'smem constant byte address 0x4 - core index']
  #allocation1 [shape = 'u32[144,128]{1,0:T(1,128)}', space=vmem, size = 0x12000, scoped, tag = 'internal scratch']
  %s0 = inlined_call_operand.vmem [shape: f32[8,32], index: 0, kind: input, shape index: {}]
  %s1 = inlined_call_operand.vmem [shape: f32[8,32], index: 1, kind: input, shape index: {}]
  %s2 = inlined_call_operand.vmem [shape: f32[8,32], index: 2, kind: input, shape index: {}]
  %s3 = inlined_call_operand.vmem [shape: f32[8,1], index: 3, kind: input, shape index: {}]
  %s4 = inlined_call_operand.vmem [shape: f32[32,32], index: 4, kind: input, shape index: {}]
  %s5 = inlined_call_operand.vmem [shape: f32[32,32], index: 5, kind: input, shape index: {}]
  %s6 = inlined_call_operand.vmem [shape: f32[32,32], index: 6, kind: input, shape index: {}]
  %s7 = inlined_call_operand.vmem [shape: f32[1,32], index: 7, kind: input, shape index: {}]
  %s8 = inlined_call_operand.vmem [shape: f32[8,32], index: 8, kind: output, shape index: {}]
  %s9 = sld [smem:[#allocation0]]
  $region42: #{gcn_lcg_forward.20} parent=0
    _
  %s11 = ssub.s32 1, %s9
  %s12 = scalar_select 0, %s11, %s9
  // Predicated region
  $region2: #{gcn_lcg_forward.20} parent=0 // pred_check
    _
  $region3: #{gcn_lcg_forward.20} parent=0 // pred_check_branch
    %14 = sbr.rel (0) target = $region5
  $region4: #{gcn_lcg_forward.20} parent=0 // pred_region
    _
  $region5: #{gcn_lcg_forward.20} parent=0 // pred_fallthru
    _
  // Predicated region
  $region6: #{gcn_lcg_forward.20} parent=0 // pred_check
    _
  $region7: #{gcn_lcg_forward.20} parent=0 // pred_check_branch
    %16 = sbr.rel (0) target = $region9
  $region8: #{gcn_lcg_forward.20} parent=0 // pred_region
    _
  $region9: #{gcn_lcg_forward.20} parent=0 // pred_fallthru
    _
  // Predicated region
  $region10: #{gcn_lcg_forward.20} parent=0 // pred_check
    _
  $region11: #{gcn_lcg_forward.20} parent=0 // pred_check_branch
    %18 = sbr.rel (0) target = $region13
  $region12: #{gcn_lcg_forward.20} parent=0 // pred_region
    _
  $region13: #{gcn_lcg_forward.20} parent=0 // pred_fallthru
    _
  // Predicated region
  $region14: #{gcn_lcg_forward.20} parent=0 // pred_check
    _
  $region15: #{gcn_lcg_forward.20} parent=0 // pred_check_branch
    %20 = sbr.rel (0) target = $region17
  $region16: #{gcn_lcg_forward.20} parent=0 // pred_region
    _
  $region17: #{gcn_lcg_forward.20} parent=0 // pred_fallthru
    _
  // Predicated region
  $region18: #{gcn_lcg_forward.20} parent=0 // pred_check
    _
  $region19: #{gcn_lcg_forward.20} parent=0 // pred_check_branch
    %22 = sbr.rel (0) target = $region21
  $region20: #{gcn_lcg_forward.20} parent=0 // pred_region
    _
  $region21: #{gcn_lcg_forward.20} parent=0 // pred_fallthru
    _
  // Predicated region
  $region22: #{gcn_lcg_forward.20} parent=0 // pred_check
    _
  $region23: #{gcn_lcg_forward.20} parent=0 // pred_check_branch
    %24 = sbr.rel (0) target = $region25
  $region24: #{gcn_lcg_forward.20} parent=0 // pred_region
    _
  $region25: #{gcn_lcg_forward.20} parent=0 // pred_fallthru
    _
  // Predicated region
  $region26: #{gcn_lcg_forward.20} parent=0 // pred_check
    _
  $region27: #{gcn_lcg_forward.20} parent=0 // pred_check_branch
    %26 = sbr.rel (0) target = $region29
  $region28: #{gcn_lcg_forward.20} parent=0 // pred_region
    _
  $region29: #{gcn_lcg_forward.20} parent=0 // pred_fallthru
    _
  // Predicated region
  $region30: #{gcn_lcg_forward.20} parent=0 // pred_check
    _
  $region31: #{gcn_lcg_forward.20} parent=0 // pred_check_branch
    %28 = sbr.rel (0) target = $region33
  $region32: #{gcn_lcg_forward.20} parent=0 // pred_region
    _
  $region33: #{gcn_lcg_forward.20} parent=0 // pred_fallthru
    _
  %v29 = vld [vmem:[%s0] sm:$0xff]
  %v30 = vld [vmem:[%s4] sm:$0xff]
  %v31 = vld [vmem:[%s4 + $0x8] sm:$0xff]
  %v32 = vld [vmem:[%s4 + $0x10] sm:$0xff]
  %v33 = vld [vmem:[%s4 + $0x18] sm:$0xff]
  %v34 = vld [vmem:[%s1] sm:$0xff]
  %v35 = vld [vmem:[%s3] sm:$0xff]
  %37 = vset.pattern.permute.xlu0 0
  %38 = vperm.xlu0 %37, %v35
  %v39 = vpop.permute.xlu0 %38
  %v41 = vmul.f32 %v34, %v39
  %v42 = vld [vmem:[%s5] sm:$0xff]
  %v43 = vld [vmem:[%s5 + $0x8] sm:$0xff]
  %v44 = vld [vmem:[%s5 + $0x10] sm:$0xff]
  %v45 = vld [vmem:[%s5 + $0x18] sm:$0xff]
  %vm46 = vcmask 261120
  %v48 = vsel %vm46, %v41, 0
  %50 = vmatprep.subr.mxu0 0.0
  %51 = vmatpush1.msra.mxu0 %v42
  %52 = vmatprep.subr.mxu0 0.0
  %53 = vmatpush1.msra.mxu0 %v43
  %54 = vmatprep.subr.mxu0 0.0
  %55 = vmatpush1.msra.mxu0 %v44
  %56 = vmatprep.subr.mxu0 0.0
  %57 = vmatpush1.msra.mxu0 %v45
  %58 = vmatprep.subr.mxu0 0.0
  %59 = vmatpush1.msra.mxu0 0.0
  %60 = vmatprep.subr.mxu0 0.0
  %61 = vmatpush1.msra.mxu0 0.0
  %62 = vmatprep.subr.mxu0 0.0
  %63 = vmatpush1.msra.mxu0 0.0
  %64 = vmatprep.subr.mxu0 0.0
  %65 = vmatpush1.msra.mxu0 0.0
  %66 = vmatprep.subr.mxu0 0.0
  %67 = vmatpush1.msra.mxu0 0.0
  %68 = vmatprep.subr.mxu0 0.0
  %69 = vmatpush1.msra.mxu0 0.0
  %70 = vmatprep.subr.mxu0 0.0
  %71 = vmatpush1.msra.mxu0 0.0
  %72 = vmatprep.subr.mxu0 0.0
  %73 = vmatpush1.msra.mxu0 0.0
  %74 = vmatprep.subr.mxu0 0.0
  %75 = vmatpush1.msra.mxu0 0.0
  %76 = vmatprep.subr.mxu0 0.0
  %77 = vmatpush1.msra.mxu0 0.0
  %78 = vmatprep.subr.mxu0 0.0
  %79 = vmatpush1.msra.mxu0 0.0
  %80 = vmatprep.subr.mxu0 0.0
  %81 = vmatpush1.msra.mxu0 0.0
  %82 = vmatprep.subr.mxu0 0.0
  %83 = vmatpush1.msra.mxu0 0.0
  %84 = vmatprep.subr.mxu0 0.0
  %85 = vmatpush1.msra.mxu0 0.0
  %86 = vmatprep.subr.mxu0 0.0
  %87 = vmatpush1.msra.mxu0 0.0
  %88 = vmatprep.subr.mxu0 0.0
  %89 = vmatpush1.msra.mxu0 0.0
  %90 = vmatprep.subr.mxu0 0.0
  %91 = vmatpush1.msra.mxu0 0.0
  %92 = vmatprep.subr.mxu0 0.0
  %93 = vmatpush1.msra.mxu0 0.0
  %94 = vmatprep.subr.mxu0 0.0
  %95 = vmatpush1.msra.mxu0 0.0
  %96 = vmatprep.subr.mxu0 0.0
  %97 = vmatpush1.msra.mxu0 0.0
  %98 = vmatprep.subr.mxu0 0.0
  %99 = vmatpush1.msra.mxu0 0.0
  %100 = vmatprep.subr.mxu0 0.0
  %101 = vmatpush1.msra.mxu0 0.0
  %102 = vmatprep.subr.mxu0 0.0
  %103 = vmatpush1.msra.mxu0 0.0
  %104 = vmatprep.subr.mxu0 0.0
  %105 = vmatpush1.msra.mxu0 0.0
  %106 = vmatprep.subr.mxu0 0.0
  %107 = vmatpush1.msra.mxu0 0.0
  %108 = vmatprep.subr.mxu0 0.0
  %109 = vmatpush1.msra.mxu0 0.0
  %110 = vmatprep.subr.mxu0 0.0
  %111 = vmatpush1.msra.mxu0 0.0
  %112 = vmatprep.subr.mxu0 0.0
  %113 = vmatpush1.msra.mxu0 0.0
  %114 = vmatprep.mubr.f32.mxu0 0.0
  %115 = vmatmul.mubr.f32.gmra.mrb[0].mxu0 %v48
  %v116 = vpop.f32.mrb[0].mxu0
  %v117 = vadd.f32 0.0, %v116
  %v118 = vpop.f32.mrb[0].mxu0
  %119 = vdwg.mxu0
  %v121 = vsel %vm46, %v29, 0
  %123 = vmatprep.subr.mxu0 0.0
  %124 = vmatpush1.msra.mxu0 %v30
  %125 = vmatprep.subr.mxu0 0.0
  %126 = vmatpush1.msra.mxu0 %v31
  %127 = vmatprep.subr.mxu0 0.0
  %128 = vmatpush1.msra.mxu0 %v32
  %129 = vmatprep.subr.mxu0 0.0
  %130 = vmatpush1.msra.mxu0 %v33
  %131 = vmatprep.subr.mxu0 0.0
  %132 = vmatpush1.msra.mxu0 0.0
  %133 = vmatprep.subr.mxu0 0.0
  %134 = vmatpush1.msra.mxu0 0.0
  %135 = vmatprep.subr.mxu0 0.0
  %136 = vmatpush1.msra.mxu0 0.0
  %137 = vmatprep.subr.mxu0 0.0
  %138 = vmatpush1.msra.mxu0 0.0
  %139 = vmatprep.subr.mxu0 0.0
  %140 = vmatpush1.msra.mxu0 0.0
  %141 = vmatprep.subr.mxu0 0.0
  %142 = vmatpush1.msra.mxu0 0.0
  %143 = vmatprep.subr.mxu0 0.0
  %144 = vmatpush1.msra.mxu0 0.0
  %145 = vmatprep.subr.mxu0 0.0
  %146 = vmatpush1.msra.mxu0 0.0
  %147 = vmatprep.subr.mxu0 0.0
  %148 = vmatpush1.msra.mxu0 0.0
  %149 = vmatprep.subr.mxu0 0.0
  %150 = vmatpush1.msra.mxu0 0.0
  %151 = vmatprep.subr.mxu0 0.0
  %152 = vmatpush1.msra.mxu0 0.0
  %153 = vmatprep.subr.mxu0 0.0
  %154 = vmatpush1.msra.mxu0 0.0
  %155 = vmatprep.subr.mxu0 0.0
  %156 = vmatpush1.msra.mxu0 0.0
  %157 = vmatprep.subr.mxu0 0.0
  %158 = vmatpush1.msra.mxu0 0.0
  %159 = vmatprep.subr.mxu0 0.0
  %160 = vmatpush1.msra.mxu0 0.0
  %161 = vmatprep.subr.mxu0 0.0
  %162 = vmatpush1.msra.mxu0 0.0
  %163 = vmatprep.subr.mxu0 0.0
  %164 = vmatpush1.msra.mxu0 0.0
  %165 = vmatprep.subr.mxu0 0.0
  %166 = vmatpush1.msra.mxu0 0.0
  %167 = vmatprep.subr.mxu0 0.0
  %168 = vmatpush1.msra.mxu0 0.0
  %169 = vmatprep.subr.mxu0 0.0
  %170 = vmatpush1.msra.mxu0 0.0
  %171 = vmatprep.subr.mxu0 0.0
  %172 = vmatpush1.msra.mxu0 0.0
  %173 = vmatprep.subr.mxu0 0.0
  %174 = vmatpush1.msra.mxu0 0.0
  %175 = vmatprep.subr.mxu0 0.0
  %176 = vmatpush1.msra.mxu0 0.0
  %177 = vmatprep.subr.mxu0 0.0
  %178 = vmatpush1.msra.mxu0 0.0
  %179 = vmatprep.subr.mxu0 0.0
  %180 = vmatpush1.msra.mxu0 0.0
  %181 = vmatprep.subr.mxu0 0.0
  %182 = vmatpush1.msra.mxu0 0.0
  %183 = vmatprep.subr.mxu0 0.0
  %184 = vmatpush1.msra.mxu0 0.0
  %185 = vmatprep.subr.mxu0 0.0
  %186 = vmatpush1.msra.mxu0 0.0
  %187 = vmatprep.mubr.f32.mxu0 0.0
  %188 = vmatmul.mubr.f32.gmra.mrb[0].mxu0 %v121
  %v189 = vpop.f32.mrb[0].mxu0
  %v190 = vadd.f32 %v117, %v189
  %v191 = vpop.f32.mrb[0].mxu0
  %192 = vdwg.mxu0
  %v193 = vld [vmem:[%s2] sm:$0xff]
  %v194 = vld [vmem:[%s6] sm:$0xff]
  %v195 = vld [vmem:[%s6 + $0x8] sm:$0xff]
  %v196 = vld [vmem:[%s6 + $0x10] sm:$0xff]
  %v197 = vld [vmem:[%s6 + $0x18] sm:$0xff]
  %v199 = vsel %vm46, %v193, 0
  %201 = vmatprep.subr.mxu0 0.0
  %202 = vmatpush1.msra.mxu0 %v194
  %203 = vmatprep.subr.mxu0 0.0
  %204 = vmatpush1.msra.mxu0 %v195
  %205 = vmatprep.subr.mxu0 0.0
  %206 = vmatpush1.msra.mxu0 %v196
  %207 = vmatprep.subr.mxu0 0.0
  %208 = vmatpush1.msra.mxu0 %v197
  %209 = vmatprep.subr.mxu0 0.0
  %210 = vmatpush1.msra.mxu0 0.0
  %211 = vmatprep.subr.mxu0 0.0
  %212 = vmatpush1.msra.mxu0 0.0
  %213 = vmatprep.subr.mxu0 0.0
  %214 = vmatpush1.msra.mxu0 0.0
  %215 = vmatprep.subr.mxu0 0.0
  %216 = vmatpush1.msra.mxu0 0.0
  %217 = vmatprep.subr.mxu0 0.0
  %218 = vmatpush1.msra.mxu0 0.0
  %219 = vmatprep.subr.mxu0 0.0
  %220 = vmatpush1.msra.mxu0 0.0
  %221 = vmatprep.subr.mxu0 0.0
  %222 = vmatpush1.msra.mxu0 0.0
  %223 = vmatprep.subr.mxu0 0.0
  %224 = vmatpush1.msra.mxu0 0.0
  %225 = vmatprep.subr.mxu0 0.0
  %226 = vmatpush1.msra.mxu0 0.0
  %227 = vmatprep.subr.mxu0 0.0
  %228 = vmatpush1.msra.mxu0 0.0
  %229 = vmatprep.subr.mxu0 0.0
  %230 = vmatpush1.msra.mxu0 0.0
  %231 = vmatprep.subr.mxu0 0.0
  %232 = vmatpush1.msra.mxu0 0.0
  %233 = vmatprep.subr.mxu0 0.0
  %234 = vmatpush1.msra.mxu0 0.0
  %235 = vmatprep.subr.mxu0 0.0
  %236 = vmatpush1.msra.mxu0 0.0
  %237 = vmatprep.subr.mxu0 0.0
  %238 = vmatpush1.msra.mxu0 0.0
  %239 = vmatprep.subr.mxu0 0.0
  %240 = vmatpush1.msra.mxu0 0.0
  %241 = vmatprep.subr.mxu0 0.0
  %242 = vmatpush1.msra.mxu0 0.0
  %243 = vmatprep.subr.mxu0 0.0
  %244 = vmatpush1.msra.mxu0 0.0
  %245 = vmatprep.subr.mxu0 0.0
  %246 = vmatpush1.msra.mxu0 0.0
  %247 = vmatprep.subr.mxu0 0.0
  %248 = vmatpush1.msra.mxu0 0.0
  %249 = vmatprep.subr.mxu0 0.0
  %250 = vmatpush1.msra.mxu0 0.0
  %251 = vmatprep.subr.mxu0 0.0
  %252 = vmatpush1.msra.mxu0 0.0
  %253 = vmatprep.subr.mxu0 0.0
  %254 = vmatpush1.msra.mxu0 0.0
  %255 = vmatprep.subr.mxu0 0.0
  %256 = vmatpush1.msra.mxu0 0.0
  %257 = vmatprep.subr.mxu0 0.0
  %258 = vmatpush1.msra.mxu0 0.0
  %259 = vmatprep.subr.mxu0 0.0
  %260 = vmatpush1.msra.mxu0 0.0
  %261 = vmatprep.subr.mxu0 0.0
  %262 = vmatpush1.msra.mxu0 0.0
  %263 = vmatprep.subr.mxu0 0.0
  %264 = vmatpush1.msra.mxu0 0.0
  %265 = vmatprep.mubr.f32.mxu0 0.0
  %266 = vmatmul.mubr.f32.gmra.mrb[0].mxu0 %v199
  %v267 = vpop.f32.mrb[0].mxu0
  %v268 = vadd.f32 0.0, %v267
  %v269 = vpop.f32.mrb[0].mxu0
  %270 = vdwg.mxu0
  %v271 = vadd.f32 %v190, %v268
  %v272 = vld [vmem:[%s7] sm:$0x1]
  %v274 = vlaneseq
  %v275 = vshrl.u32 %v274, 7
  %v276 = vsub.s32 0, %v275
  %v277 = vrot.slane %v272, %v276
  %v279 = vadd.f32 %v271, %v277
  %280 = vst.msk [vmem:[%s8] sm:$0xff] %vm46, %v279
  // Predicated region
  $region34: #{gcn_lcg_forward.20} parent=0 // pred_check
    _
  $region35: #{gcn_lcg_forward.20} parent=0 // pred_check_branch
    %282 = sbr.rel (0) target = $region37
  $region36: #{gcn_lcg_forward.20} parent=0 // pred_region
    _
  $region37: #{gcn_lcg_forward.20} parent=0 // pred_fallthru
    _
  // Predicated region
  $region38: #{gcn_lcg_forward.20} parent=0 // pred_check
    _
  $region39: #{gcn_lcg_forward.20} parent=0 // pred_check_branch
    %284 = sbr.rel (0) target = $region41
  $region40: #{gcn_lcg_forward.20} parent=0 // pred_region
    _
  $region41: #{gcn_lcg_forward.20} parent=0 // pred_fallthru
    _

// kernel: gcn_lcg_forward.17
$region0: #{gcn_lcg_forward.17}
  #allocation0 [shape = 'u32[]', space=smem, size = 0x4, offset = 0x4, fixed_abs, tag = 'smem constant byte address 0x4 - core index']
  #allocation1 [shape = 'u32[144,128]{1,0:T(1,128)}', space=vmem, size = 0x12000, scoped, tag = 'internal scratch']
  #allocation2 [shape = 's32[1]{0}', space=sflag, size = 0x4, scoped, tag = 'scoped memory for gcn_lcg_forward.17']
  #allocation3 [shape = 'u8[512]{0}', space=smem, size = 0x200, scoped, tag = 'prefetched SMEM operand 0']
  #allocation4 [shape = 'u8[512]{0}', space=smem, size = 0x200, scoped, tag = 'prefetched SMEM operand 1']
  %s0 = inlined_call_operand.vmem [shape: s32[16], index: 0, kind: input, shape index: {}]
  %s1 = inlined_call_operand.vmem [shape: s32[16], index: 1, kind: input, shape index: {}]
  %s2 = inlined_call_operand.vmem [shape: f32[8,32], index: 2, kind: input, shape index: {}]
  %s3 = inlined_call_operand.vmem [shape: f32[6,32], index: 3, kind: output, shape index: {}]
  %s4 = sld [smem:[#allocation0]]
  $region21: #{gcn_lcg_forward.17} parent=0
    _
  %s6 = ssub.s32 1, %s4
  %s7 = scalar_select 0, %s6, %s4
  %s8 = sshll.u32 %s0, 4
  %s9 = int_to_ptr.vmem [resolvable:$true] %s8
  %11 = dma.vmem_to_smem %s9, 16, [#allocation3], [#allocation2]
  %s12 = sshll.u32 %s1, 4
  %s13 = int_to_ptr.vmem [resolvable:$true] %s12
  %15 = dma.vmem_to_smem %s13, 16, [#allocation4], [#allocation2]
  %16 = dma.done [#allocation2], 32
  %17 = sfence
  // Predicated region
  $region2: #{gcn_lcg_forward.17} parent=0 // pred_check
    _
  $region3: #{gcn_lcg_forward.17} parent=0 // pred_check_branch
    %19 = sbr.rel (0) target = $region5
  $region4: #{gcn_lcg_forward.17} parent=0 // pred_region
    _
  $region5: #{gcn_lcg_forward.17} parent=0 // pred_fallthru
    _
  %vm20 = vcmask 259072
  %21 = vst.msk [vmem:[%s3] sm:$0x3f] %vm20, 0.0
  loop: start=0, step=1, limit=16
  $region6: #{gcn_lcg_forward.17} parent=0 // loop_pre_header
    _
  $region7: #{gcn_lcg_forward.17} parent=0 // loop_header
    %s23 = sphi 0, %s27
    %p24 = scmp.ge.s32.totalorder %s23, 16
  $region8: #{gcn_lcg_forward.17} parent=0 // loop_header_branch
    %26 = sbr.rel (%p24) target = $region12
  $region9: #{gcn_lcg_forward.17} parent=0 // loop_body
    %s28 = sld [smem:[#allocation3 + %s23]]
    %s29 = sld [smem:[#allocation4 + %s23]]
    %s30 = scalar_lea.vmem %s3, %s29
    %v31 = vld [vmem:[%s30] sm:$0x1]
    %s32 = scalar_lea.vmem %s2, %s28
    %v33 = vld [vmem:[%s32] sm:$0x1]
    %v34 = vadd.f32 %v31, %v33
    %vm35 = vcmask 253952
    %36 = vst.msk [vmem:[%s30] sm:$0x1] %vm35, %v34
  $region10: #{gcn_lcg_forward.17} parent=0 // loop_footer
    %s27 = sadd.s32 1, %s23
  $region11: #{gcn_lcg_forward.17} parent=0 // loop_footer_branch
    %22 = sbr.rel target = $region7
  $region12: #{gcn_lcg_forward.17} parent=0 // loop_exit
    _
  // Predicated region
  $region13: #{gcn_lcg_forward.17} parent=0 // pred_check
    _
  $region14: #{gcn_lcg_forward.17} parent=0 // pred_check_branch
    %38 = sbr.rel (0) target = $region16
  $region15: #{gcn_lcg_forward.17} parent=0 // pred_region
    _
  $region16: #{gcn_lcg_forward.17} parent=0 // pred_fallthru
    _
  // Predicated region
  $region17: #{gcn_lcg_forward.17} parent=0 // pred_check
    _
  $region18: #{gcn_lcg_forward.17} parent=0 // pred_check_branch
    %40 = sbr.rel (0) target = $region20
  $region19: #{gcn_lcg_forward.17} parent=0 // pred_region
    _
  $region20: #{gcn_lcg_forward.17} parent=0 // pred_fallthru
    _

// kernel: gcn_lcg_forward.18
$region0: #{gcn_lcg_forward.18}
  #allocation0 [shape = 'u32[]', space=smem, size = 0x4, offset = 0x4, fixed_abs, tag = 'smem constant byte address 0x4 - core index']
  #allocation1 [shape = 'u32[144,128]{1,0:T(1,128)}', space=vmem, size = 0x12000, scoped, tag = 'internal scratch']
  %s0 = inlined_call_operand.vmem [shape: f32[8,32], index: 0, kind: input, shape index: {}]
  %s1 = inlined_call_operand.vmem [shape: f32[8,32], index: 1, kind: input, shape index: {}]
  %s2 = inlined_call_operand.vmem [shape: f32[8,1], index: 2, kind: input, shape index: {}]
  %s3 = inlined_call_operand.vmem [shape: f32[32,32], index: 3, kind: input, shape index: {}]
  %s4 = inlined_call_operand.vmem [shape: f32[32,32], index: 4, kind: input, shape index: {}]
  %s5 = inlined_call_operand.vmem [shape: f32[1,32], index: 5, kind: input, shape index: {}]
  %s6 = inlined_call_operand.vmem [shape: f32[8,32], index: 6, kind: output, shape index: {}]
  %s7 = sld [smem:[#allocation0]]
  $region34: #{gcn_lcg_forward.18} parent=0
    _
  %s9 = ssub.s32 1, %s7
  %s10 = scalar_select 0, %s9, %s7
  // Predicated region
  $region2: #{gcn_lcg_forward.18} parent=0 // pred_check
    _
  $region3: #{gcn_lcg_forward.18} parent=0 // pred_check_branch
    %12 = sbr.rel (0) target = $region5
  $region4: #{gcn_lcg_forward.18} parent=0 // pred_region
    _
  $region5: #{gcn_lcg_forward.18} parent=0 // pred_fallthru
    _
  // Predicated region
  $region6: #{gcn_lcg_forward.18} parent=0 // pred_check
    _
  $region7: #{gcn_lcg_forward.18} parent=0 // pred_check_branch
    %14 = sbr.rel (0) target = $region9
  $region8: #{gcn_lcg_forward.18} parent=0 // pred_region
    _
  $region9: #{gcn_lcg_forward.18} parent=0 // pred_fallthru
    _
  // Predicated region
  $region10: #{gcn_lcg_forward.18} parent=0 // pred_check
    _
  $region11: #{gcn_lcg_forward.18} parent=0 // pred_check_branch
    %16 = sbr.rel (0) target = $region13
  $region12: #{gcn_lcg_forward.18} parent=0 // pred_region
    _
  $region13: #{gcn_lcg_forward.18} parent=0 // pred_fallthru
    _
  // Predicated region
  $region14: #{gcn_lcg_forward.18} parent=0 // pred_check
    _
  $region15: #{gcn_lcg_forward.18} parent=0 // pred_check_branch
    %18 = sbr.rel (0) target = $region17
  $region16: #{gcn_lcg_forward.18} parent=0 // pred_region
    _
  $region17: #{gcn_lcg_forward.18} parent=0 // pred_fallthru
    _
  // Predicated region
  $region18: #{gcn_lcg_forward.18} parent=0 // pred_check
    _
  $region19: #{gcn_lcg_forward.18} parent=0 // pred_check_branch
    %20 = sbr.rel (0) target = $region21
  $region20: #{gcn_lcg_forward.18} parent=0 // pred_region
    _
  $region21: #{gcn_lcg_forward.18} parent=0 // pred_fallthru
    _
  // Predicated region
  $region22: #{gcn_lcg_forward.18} parent=0 // pred_check
    _
  $region23: #{gcn_lcg_forward.18} parent=0 // pred_check_branch
    %22 = sbr.rel (0) target = $region25
  $region24: #{gcn_lcg_forward.18} parent=0 // pred_region
    _
  $region25: #{gcn_lcg_forward.18} parent=0 // pred_fallthru
    _
  %v23 = vld [vmem:[%s0] sm:$0xff]
  %v24 = vld [vmem:[%s3] sm:$0xff]
  %v25 = vld [vmem:[%s3 + $0x8] sm:$0xff]
  %v26 = vld [vmem:[%s3 + $0x10] sm:$0xff]
  %v27 = vld [vmem:[%s3 + $0x18] sm:$0xff]
  %v28 = vld [vmem:[%s1] sm:$0xff]
  %v29 = vld [vmem:[%s2] sm:$0xff]
  %31 = vset.pattern.permute.xlu0 0
  %32 = vperm.xlu0 %31, %v29
  %v33 = vpop.permute.xlu0 %32
  %v35 = vmul.f32 %v28, %v33
  %v36 = vld [vmem:[%s4] sm:$0xff]
  %v37 = vld [vmem:[%s4 + $0x8] sm:$0xff]
  %v38 = vld [vmem:[%s4 + $0x10] sm:$0xff]
  %v39 = vld [vmem:[%s4 + $0x18] sm:$0xff]
  %vm40 = vcmask 261120
  %v42 = vsel %vm40, %v35, 0
  %44 = vmatprep.subr.mxu0 0.0
  %45 = vmatpush1.msra.mxu0 %v36
  %46 = vmatprep.subr.mxu0 0.0
  %47 = vmatpush1.msra.mxu0 %v37
  %48 = vmatprep.subr.mxu0 0.0
  %49 = vmatpush1.msra.mxu0 %v38
  %50 = vmatprep.subr.mxu0 0.0
  %51 = vmatpush1.msra.mxu0 %v39
  %52 = vmatprep.subr.mxu0 0.0
  %53 = vmatpush1.msra.mxu0 0.0
  %54 = vmatprep.subr.mxu0 0.0
  %55 = vmatpush1.msra.mxu0 0.0
  %56 = vmatprep.subr.mxu0 0.0
  %57 = vmatpush1.msra.mxu0 0.0
  %58 = vmatprep.subr.mxu0 0.0
  %59 = vmatpush1.msra.mxu0 0.0
  %60 = vmatprep.subr.mxu0 0.0
  %61 = vmatpush1.msra.mxu0 0.0
  %62 = vmatprep.subr.mxu0 0.0
  %63 = vmatpush1.msra.mxu0 0.0
  %64 = vmatprep.subr.mxu0 0.0
  %65 = vmatpush1.msra.mxu0 0.0
  %66 = vmatprep.subr.mxu0 0.0
  %67 = vmatpush1.msra.mxu0 0.0
  %68 = vmatprep.subr.mxu0 0.0
  %69 = vmatpush1.msra.mxu0 0.0
  %70 = vmatprep.subr.mxu0 0.0
  %71 = vmatpush1.msra.mxu0 0.0
  %72 = vmatprep.subr.mxu0 0.0
  %73 = vmatpush1.msra.mxu0 0.0
  %74 = vmatprep.subr.mxu0 0.0
  %75 = vmatpush1.msra.mxu0 0.0
  %76 = vmatprep.subr.mxu0 0.0
  %77 = vmatpush1.msra.mxu0 0.0
  %78 = vmatprep.subr.mxu0 0.0
  %79 = vmatpush1.msra.mxu0 0.0
  %80 = vmatprep.subr.mxu0 0.0
  %81 = vmatpush1.msra.mxu0 0.0
  %82 = vmatprep.subr.mxu0 0.0
  %83 = vmatpush1.msra.mxu0 0.0
  %84 = vmatprep.subr.mxu0 0.0
  %85 = vmatpush1.msra.mxu0 0.0
  %86 = vmatprep.subr.mxu0 0.0
  %87 = vmatpush1.msra.mxu0 0.0
  %88 = vmatprep.subr.mxu0 0.0
  %89 = vmatpush1.msra.mxu0 0.0
  %90 = vmatprep.subr.mxu0 0.0
  %91 = vmatpush1.msra.mxu0 0.0
  %92 = vmatprep.subr.mxu0 0.0
  %93 = vmatpush1.msra.mxu0 0.0
  %94 = vmatprep.subr.mxu0 0.0
  %95 = vmatpush1.msra.mxu0 0.0
  %96 = vmatprep.subr.mxu0 0.0
  %97 = vmatpush1.msra.mxu0 0.0
  %98 = vmatprep.subr.mxu0 0.0
  %99 = vmatpush1.msra.mxu0 0.0
  %100 = vmatprep.subr.mxu0 0.0
  %101 = vmatpush1.msra.mxu0 0.0
  %102 = vmatprep.subr.mxu0 0.0
  %103 = vmatpush1.msra.mxu0 0.0
  %104 = vmatprep.subr.mxu0 0.0
  %105 = vmatpush1.msra.mxu0 0.0
  %106 = vmatprep.subr.mxu0 0.0
  %107 = vmatpush1.msra.mxu0 0.0
  %108 = vmatprep.mubr.f32.mxu0 0.0
  %109 = vmatmul.mubr.f32.gmra.mrb[0].mxu0 %v42
  %v110 = vpop.f32.mrb[0].mxu0
  %v111 = vadd.f32 0.0, %v110
  %v112 = vpop.f32.mrb[0].mxu0
  %113 = vdwg.mxu0
  %v115 = vsel %vm40, %v23, 0
  %117 = vmatprep.subr.mxu0 0.0
  %118 = vmatpush1.msra.mxu0 %v24
  %119 = vmatprep.subr.mxu0 0.0
  %120 = vmatpush1.msra.mxu0 %v25
  %121 = vmatprep.subr.mxu0 0.0
  %122 = vmatpush1.msra.mxu0 %v26
  %123 = vmatprep.subr.mxu0 0.0
  %124 = vmatpush1.msra.mxu0 %v27
  %125 = vmatprep.subr.mxu0 0.0
  %126 = vmatpush1.msra.mxu0 0.0
  %127 = vmatprep.subr.mxu0 0.0
  %128 = vmatpush1.msra.mxu0 0.0
  %129 = vmatprep.subr.mxu0 0.0
  %130 = vmatpush1.msra.mxu0 0.0
  %131 = vmatprep.subr.mxu0 0.0
  %132 = vmatpush1.msra.mxu0 0.0
  %133 = vmatprep.subr.mxu0 0.0
  %134 = vmatpush1.msra.mxu0 0.0
  %135 = vmatprep.subr.mxu0 0.0
  %136 = vmatpush1.msra.mxu0 0.0
  %137 = vmatprep.subr.mxu0 0.0
  %138 = vmatpush1.msra.mxu0 0.0
  %139 = vmatprep.subr.mxu0 0.0
  %140 = vmatpush1.msra.mxu0 0.0
  %141 = vmatprep.subr.mxu0 0.0
  %142 = vmatpush1.msra.mxu0 0.0
  %143 = vmatprep.subr.mxu0 0.0
  %144 = vmatpush1.msra.mxu0 0.0
  %145 = vmatprep.subr.mxu0 0.0
  %146 = vmatpush1.msra.mxu0 0.0
  %147 = vmatprep.subr.mxu0 0.0
  %148 = vmatpush1.msra.mxu0 0.0
  %149 = vmatprep.subr.mxu0 0.0
  %150 = vmatpush1.msra.mxu0 0.0
  %151 = vmatprep.subr.mxu0 0.0
  %152 = vmatpush1.msra.mxu0 0.0
  %153 = vmatprep.subr.mxu0 0.0
  %154 = vmatpush1.msra.mxu0 0.0
  %155 = vmatprep.subr.mxu0 0.0
  %156 = vmatpush1.msra.mxu0 0.0
  %157 = vmatprep.subr.mxu0 0.0
  %158 = vmatpush1.msra.mxu0 0.0
  %159 = vmatprep.subr.mxu0 0.0
  %160 = vmatpush1.msra.mxu0 0.0
  %161 = vmatprep.subr.mxu0 0.0
  %162 = vmatpush1.msra.mxu0 0.0
  %163 = vmatprep.subr.mxu0 0.0
  %164 = vmatpush1.msra.mxu0 0.0
  %165 = vmatprep.subr.mxu0 0.0
  %166 = vmatpush1.msra.mxu0 0.0
  %167 = vmatprep.subr.mxu0 0.0
  %168 = vmatpush1.msra.mxu0 0.0
  %169 = vmatprep.subr.mxu0 0.0
  %170 = vmatpush1.msra.mxu0 0.0
  %171 = vmatprep.subr.mxu0 0.0
  %172 = vmatpush1.msra.mxu0 0.0
  %173 = vmatprep.subr.mxu0 0.0
  %174 = vmatpush1.msra.mxu0 0.0
  %175 = vmatprep.subr.mxu0 0.0
  %176 = vmatpush1.msra.mxu0 0.0
  %177 = vmatprep.subr.mxu0 0.0
  %178 = vmatpush1.msra.mxu0 0.0
  %179 = vmatprep.subr.mxu0 0.0
  %180 = vmatpush1.msra.mxu0 0.0
  %181 = vmatprep.mubr.f32.mxu0 0.0
  %182 = vmatmul.mubr.f32.gmra.mrb[0].mxu0 %v115
  %v183 = vpop.f32.mrb[0].mxu0
  %v184 = vadd.f32 %v111, %v183
  %v185 = vpop.f32.mrb[0].mxu0
  %186 = vdwg.mxu0
  %v187 = vld [vmem:[%s5] sm:$0x1]
  %v189 = vlaneseq
  %v190 = vshrl.u32 %v189, 7
  %v191 = vsub.s32 0, %v190
  %v192 = vrot.slane %v187, %v191
  %v194 = vadd.f32 %v184, %v192
  %195 = vst.msk [vmem:[%s6] sm:$0xff] %vm40, %v194
  // Predicated region
  $region26: #{gcn_lcg_forward.18} parent=0 // pred_check
    _
  $region27: #{gcn_lcg_forward.18} parent=0 // pred_check_branch
    %197 = sbr.rel (0) target = $region29
  $region28: #{gcn_lcg_forward.18} parent=0 // pred_region
    _
  $region29: #{gcn_lcg_forward.18} parent=0 // pred_fallthru
    _
  // Predicated region
  $region30: #{gcn_lcg_forward.18} parent=0 // pred_check
    _
  $region31: #{gcn_lcg_forward.18} parent=0 // pred_check_branch
    %199 = sbr.rel (0) target = $region33
  $region32: #{gcn_lcg_forward.18} parent=0 // pred_region
    _
  $region33: #{gcn_lcg_forward.18} parent=0 // pred_fallthru
    _

// kernel: gcn_lcg_forward.25
$region0: #{gcn_lcg_forward.25}
  #allocation0 [shape = 'u32[]', space=smem, size = 0x4, offset = 0x4, fixed_abs, tag = 'smem constant byte address 0x4 - core index']
  #allocation1 [shape = 'u32[144,128]{1,0:T(1,128)}', space=vmem, size = 0x12000, scoped, tag = 'internal scratch']
  %s0 = inlined_call_operand.vmem [shape: f32[8,32], index: 0, kind: input, shape index: {}]
  %s1 = inlined_call_operand.vmem [shape: f32[8,32], index: 1, kind: input, shape index: {}]
  %s2 = inlined_call_operand.vmem [shape: f32[8,1], index: 2, kind: input, shape index: {}]
  %s3 = inlined_call_operand.vmem [shape: f32[32,32], index: 3, kind: input, shape index: {}]
  %s4 = inlined_call_operand.vmem [shape: f32[32,32], index: 4, kind: input, shape index: {}]
  %s5 = inlined_call_operand.vmem [shape: f32[1,32], index: 5, kind: input, shape index: {}]
  %s6 = inlined_call_operand.hbm [shape: f32[8,32], index: 6, kind: output, shape index: {}]
  %s7 = sld [smem:[#allocation0]]
  $region34: #{gcn_lcg_forward.25} parent=0
    _
  %s9 = ssub.s32 1, %s7
  %s10 = scalar_select 0, %s9, %s7
  $region1: #{gcn_lcg_forward.25} parent=0
    #allocation2 [shape = 'u8[4096]{0}', space=vmem, size = 0x1000, scoped, tag = 'output window, operand 0, single buffered']
    #allocation3 [shape = 's32[1]{0}', space=sflag, size = 0x4, scoped, tag = 'scoped memory for gcn_lcg_forward.25']
    %11 = vsyncpa [#allocation3], 0
    // Predicated region
    $region2: #{gcn_lcg_forward.25} parent=1 // pred_check
      _
    $region3: #{gcn_lcg_forward.25} parent=1 // pred_check_branch
      %13 = sbr.rel (0) target = $region5
    $region4: #{gcn_lcg_forward.25} parent=1 // pred_region
      _
    $region5: #{gcn_lcg_forward.25} parent=1 // pred_fallthru
      _
    // Predicated region
    $region6: #{gcn_lcg_forward.25} parent=1 // pred_check
      _
    $region7: #{gcn_lcg_forward.25} parent=1 // pred_check_branch
      %15 = sbr.rel (0) target = $region9
    $region8: #{gcn_lcg_forward.25} parent=1 // pred_region
      _
    $region9: #{gcn_lcg_forward.25} parent=1 // pred_fallthru
      _
    // Predicated region
    $region10: #{gcn_lcg_forward.25} parent=1 // pred_check
      _
    $region11: #{gcn_lcg_forward.25} parent=1 // pred_check_branch
      %17 = sbr.rel (0) target = $region13
    $region12: #{gcn_lcg_forward.25} parent=1 // pred_region
      _
    $region13: #{gcn_lcg_forward.25} parent=1 // pred_fallthru
      _
    // Predicated region
    $region14: #{gcn_lcg_forward.25} parent=1 // pred_check
      _
    $region15: #{gcn_lcg_forward.25} parent=1 // pred_check_branch
      %19 = sbr.rel (0) target = $region17
    $region16: #{gcn_lcg_forward.25} parent=1 // pred_region
      _
    $region17: #{gcn_lcg_forward.25} parent=1 // pred_fallthru
      _
    // Predicated region
    $region18: #{gcn_lcg_forward.25} parent=1 // pred_check
      _
    $region19: #{gcn_lcg_forward.25} parent=1 // pred_check_branch
      %21 = sbr.rel (0) target = $region21
    $region20: #{gcn_lcg_forward.25} parent=1 // pred_region
      _
    $region21: #{gcn_lcg_forward.25} parent=1 // pred_fallthru
      _
    // Predicated region
    $region22: #{gcn_lcg_forward.25} parent=1 // pred_check
      _
    $region23: #{gcn_lcg_forward.25} parent=1 // pred_check_branch
      %23 = sbr.rel (0) target = $region25
    $region24: #{gcn_lcg_forward.25} parent=1 // pred_region
      _
    $region25: #{gcn_lcg_forward.25} parent=1 // pred_fallthru
      _
    %v24 = vld [vmem:[%s0] sm:$0xff]
    %v25 = vld [vmem:[%s3] sm:$0xff]
    %v26 = vld [vmem:[%s3 + $0x8] sm:$0xff]
    %v27 = vld [vmem:[%s3 + $0x10] sm:$0xff]
    %v28 = vld [vmem:[%s3 + $0x18] sm:$0xff]
    %v29 = vld [vmem:[%s1] sm:$0xff]
    %v30 = vld [vmem:[%s2] sm:$0xff]
    %32 = vset.pattern.permute.xlu0 0
    %33 = vperm.xlu0 %32, %v30
    %v34 = vpop.permute.xlu0 %33
    %v36 = vmul.f32 %v29, %v34
    %v37 = vld [vmem:[%s4] sm:$0xff]
    %v38 = vld [vmem:[%s4 + $0x8] sm:$0xff]
    %v39 = vld [vmem:[%s4 + $0x10] sm:$0xff]
    %v40 = vld [vmem:[%s4 + $0x18] sm:$0xff]
    %vm41 = vcmask 261120
    %v43 = vsel %vm41, %v36, 0
    %45 = vmatprep.subr.mxu0 0.0
    %46 = vmatpush1.msra.mxu0 %v37
    %47 = vmatprep.subr.mxu0 0.0
    %48 = vmatpush1.msra.mxu0 %v38
    %49 = vmatprep.subr.mxu0 0.0
    %50 = vmatpush1.msra.mxu0 %v39
    %51 = vmatprep.subr.mxu0 0.0
    %52 = vmatpush1.msra.mxu0 %v40
    %53 = vmatprep.subr.mxu0 0.0
    %54 = vmatpush1.msra.mxu0 0.0
    %55 = vmatprep.subr.mxu0 0.0
    %56 = vmatpush1.msra.mxu0 0.0
    %57 = vmatprep.subr.mxu0 0.0
    %58 = vmatpush1.msra.mxu0 0.0
    %59 = vmatprep.subr.mxu0 0.0
    %60 = vmatpush1.msra.mxu0 0.0
    %61 = vmatprep.subr.mxu0 0.0
    %62 = vmatpush1.msra.mxu0 0.0
    %63 = vmatprep.subr.mxu0 0.0
    %64 = vmatpush1.msra.mxu0 0.0
    %65 = vmatprep.subr.mxu0 0.0
    %66 = vmatpush1.msra.mxu0 0.0
    %67 = vmatprep.subr.mxu0 0.0
    %68 = vmatpush1.msra.mxu0 0.0
    %69 = vmatprep.subr.mxu0 0.0
    %70 = vmatpush1.msra.mxu0 0.0
    %71 = vmatprep.subr.mxu0 0.0
    %72 = vmatpush1.msra.mxu0 0.0
    %73 = vmatprep.subr.mxu0 0.0
    %74 = vmatpush1.msra.mxu0 0.0
    %75 = vmatprep.subr.mxu0 0.0
    %76 = vmatpush1.msra.mxu0 0.0
    %77 = vmatprep.subr.mxu0 0.0
    %78 = vmatpush1.msra.mxu0 0.0
    %79 = vmatprep.subr.mxu0 0.0
    %80 = vmatpush1.msra.mxu0 0.0
    %81 = vmatprep.subr.mxu0 0.0
    %82 = vmatpush1.msra.mxu0 0.0
    %83 = vmatprep.subr.mxu0 0.0
    %84 = vmatpush1.msra.mxu0 0.0
    %85 = vmatprep.subr.mxu0 0.0
    %86 = vmatpush1.msra.mxu0 0.0
    %87 = vmatprep.subr.mxu0 0.0
    %88 = vmatpush1.msra.mxu0 0.0
    %89 = vmatprep.subr.mxu0 0.0
    %90 = vmatpush1.msra.mxu0 0.0
    %91 = vmatprep.subr.mxu0 0.0
    %92 = vmatpush1.msra.mxu0 0.0
    %93 = vmatprep.subr.mxu0 0.0
    %94 = vmatpush1.msra.mxu0 0.0
    %95 = vmatprep.subr.mxu0 0.0
    %96 = vmatpush1.msra.mxu0 0.0
    %97 = vmatprep.subr.mxu0 0.0
    %98 = vmatpush1.msra.mxu0 0.0
    %99 = vmatprep.subr.mxu0 0.0
    %100 = vmatpush1.msra.mxu0 0.0
    %101 = vmatprep.subr.mxu0 0.0
    %102 = vmatpush1.msra.mxu0 0.0
    %103 = vmatprep.subr.mxu0 0.0
    %104 = vmatpush1.msra.mxu0 0.0
    %105 = vmatprep.subr.mxu0 0.0
    %106 = vmatpush1.msra.mxu0 0.0
    %107 = vmatprep.subr.mxu0 0.0
    %108 = vmatpush1.msra.mxu0 0.0
    %109 = vmatprep.mubr.f32.mxu0 0.0
    %110 = vmatmul.mubr.f32.gmra.mrb[0].mxu0 %v43
    %v111 = vpop.f32.mrb[0].mxu0
    %v112 = vadd.f32 0.0, %v111
    %v113 = vpop.f32.mrb[0].mxu0
    %114 = vdwg.mxu0
    %v116 = vsel %vm41, %v24, 0
    %118 = vmatprep.subr.mxu0 0.0
    %119 = vmatpush1.msra.mxu0 %v25
    %120 = vmatprep.subr.mxu0 0.0
    %121 = vmatpush1.msra.mxu0 %v26
    %122 = vmatprep.subr.mxu0 0.0
    %123 = vmatpush1.msra.mxu0 %v27
    %124 = vmatprep.subr.mxu0 0.0
    %125 = vmatpush1.msra.mxu0 %v28
    %126 = vmatprep.subr.mxu0 0.0
    %127 = vmatpush1.msra.mxu0 0.0
    %128 = vmatprep.subr.mxu0 0.0
    %129 = vmatpush1.msra.mxu0 0.0
    %130 = vmatprep.subr.mxu0 0.0
    %131 = vmatpush1.msra.mxu0 0.0
    %132 = vmatprep.subr.mxu0 0.0
    %133 = vmatpush1.msra.mxu0 0.0
    %134 = vmatprep.subr.mxu0 0.0
    %135 = vmatpush1.msra.mxu0 0.0
    %136 = vmatprep.subr.mxu0 0.0
    %137 = vmatpush1.msra.mxu0 0.0
    %138 = vmatprep.subr.mxu0 0.0
    %139 = vmatpush1.msra.mxu0 0.0
    %140 = vmatprep.subr.mxu0 0.0
    %141 = vmatpush1.msra.mxu0 0.0
    %142 = vmatprep.subr.mxu0 0.0
    %143 = vmatpush1.msra.mxu0 0.0
    %144 = vmatprep.subr.mxu0 0.0
    %145 = vmatpush1.msra.mxu0 0.0
    %146 = vmatprep.subr.mxu0 0.0
    %147 = vmatpush1.msra.mxu0 0.0
    %148 = vmatprep.subr.mxu0 0.0
    %149 = vmatpush1.msra.mxu0 0.0
    %150 = vmatprep.subr.mxu0 0.0
    %151 = vmatpush1.msra.mxu0 0.0
    %152 = vmatprep.subr.mxu0 0.0
    %153 = vmatpush1.msra.mxu0 0.0
    %154 = vmatprep.subr.mxu0 0.0
    %155 = vmatpush1.msra.mxu0 0.0
    %156 = vmatprep.subr.mxu0 0.0
    %157 = vmatpush1.msra.mxu0 0.0
    %158 = vmatprep.subr.mxu0 0.0
    %159 = vmatpush1.msra.mxu0 0.0
    %160 = vmatprep.subr.mxu0 0.0
    %161 = vmatpush1.msra.mxu0 0.0
    %162 = vmatprep.subr.mxu0 0.0
    %163 = vmatpush1.msra.mxu0 0.0
    %164 = vmatprep.subr.mxu0 0.0
    %165 = vmatpush1.msra.mxu0 0.0
    %166 = vmatprep.subr.mxu0 0.0
    %167 = vmatpush1.msra.mxu0 0.0
    %168 = vmatprep.subr.mxu0 0.0
    %169 = vmatpush1.msra.mxu0 0.0
    %170 = vmatprep.subr.mxu0 0.0
    %171 = vmatpush1.msra.mxu0 0.0
    %172 = vmatprep.subr.mxu0 0.0
    %173 = vmatpush1.msra.mxu0 0.0
    %174 = vmatprep.subr.mxu0 0.0
    %175 = vmatpush1.msra.mxu0 0.0
    %176 = vmatprep.subr.mxu0 0.0
    %177 = vmatpush1.msra.mxu0 0.0
    %178 = vmatprep.subr.mxu0 0.0
    %179 = vmatpush1.msra.mxu0 0.0
    %180 = vmatprep.subr.mxu0 0.0
    %181 = vmatpush1.msra.mxu0 0.0
    %182 = vmatprep.mubr.f32.mxu0 0.0
    %183 = vmatmul.mubr.f32.gmra.mrb[0].mxu0 %v116
    %v184 = vpop.f32.mrb[0].mxu0
    %v185 = vadd.f32 %v112, %v184
    %v186 = vpop.f32.mrb[0].mxu0
    %187 = vdwg.mxu0
    %v188 = vld [vmem:[%s5] sm:$0x1]
    %v190 = vlaneseq
    %v191 = vshrl.u32 %v190, 7
    %v192 = vsub.s32 0, %v191
    %v193 = vrot.slane %v188, %v192
    %v195 = vadd.f32 %v185, %v193
    %196 = vst.msk [vmem:[#allocation2] sm:$0xff] %vm41, %v195
    // Predicated region
    $region26: #{gcn_lcg_forward.25} parent=1 // pred_check
      _
    $region27: #{gcn_lcg_forward.25} parent=1 // pred_check_branch
      %198 = sbr.rel (0) target = $region29
    $region28: #{gcn_lcg_forward.25} parent=1 // pred_region
      %s200 = ssub.s32 128, 128
      %201 = vsyncadd [#allocation3], %s200
      %s203 = sshll.u32 [#allocation2], 4
      %s204 = int_to_ptr.vmem [resolvable:$true] %s203
      %206 = dma.vmem_to_hbm [thread:$0]  %s204, 128, %s6, [#allocation3]
    $region29: #{gcn_lcg_forward.25} parent=1 // pred_fallthru
      _
    // Predicated region
    $region30: #{gcn_lcg_forward.25} parent=1 // pred_check
      _
    $region31: #{gcn_lcg_forward.25} parent=1 // pred_check_branch
      %208 = sbr.rel (0) target = $region33
    $region32: #{gcn_lcg_forward.25} parent=1 // pred_region
      %209 = dma.done [#allocation3], 128
    $region33: #{gcn_lcg_forward.25} parent=1 // pred_fallthru
      _
    %210 = vsyncpa [#allocation3], 1

// kernel: gcn_lcg_forward.27
$region0: #{gcn_lcg_forward.27}
  #allocation0 [shape = 'u32[]', space=smem, size = 0x4, offset = 0x4, fixed_abs, tag = 'smem constant byte address 0x4 - core index']
  #allocation1 [shape = 'u32[144,128]{1,0:T(1,128)}', space=vmem, size = 0x12000, scoped, tag = 'internal scratch']
  %s0 = inlined_call_operand.vmem [shape: f32[8,32], index: 0, kind: input, shape index: {}]
  %s1 = inlined_call_operand.vmem [shape: f32[8,32], index: 1, kind: input, shape index: {}]
  %s2 = inlined_call_operand.vmem [shape: f32[8,32], index: 2, kind: input, shape index: {}]
  %s3 = inlined_call_operand.vmem [shape: f32[8,1], index: 3, kind: input, shape index: {}]
  %s4 = inlined_call_operand.vmem [shape: f32[32,32], index: 4, kind: input, shape index: {}]
  %s5 = inlined_call_operand.vmem [shape: f32[32,32], index: 5, kind: input, shape index: {}]
  %s6 = inlined_call_operand.vmem [shape: f32[32,32], index: 6, kind: input, shape index: {}]
  %s7 = inlined_call_operand.vmem [shape: f32[1,32], index: 7, kind: input, shape index: {}]
  %s8 = inlined_call_operand.hbm [shape: f32[8,32], index: 8, kind: output, shape index: {}]
  %s9 = sld [smem:[#allocation0]]
  $region42: #{gcn_lcg_forward.27} parent=0
    _
  %s11 = ssub.s32 1, %s9
  %s12 = scalar_select 0, %s11, %s9
  $region1: #{gcn_lcg_forward.27} parent=0
    #allocation2 [shape = 'u8[4096]{0}', space=vmem, size = 0x1000, scoped, tag = 'output window, operand 0, single buffered']
    #allocation3 [shape = 's32[1]{0}', space=sflag, size = 0x4, scoped, tag = 'scoped memory for gcn_lcg_forward.27']
    %13 = vsyncpa [#allocation3], 0
    // Predicated region
    $region2: #{gcn_lcg_forward.27} parent=1 // pred_check
      _
    $region3: #{gcn_lcg_forward.27} parent=1 // pred_check_branch
      %15 = sbr.rel (0) target = $region5
    $region4: #{gcn_lcg_forward.27} parent=1 // pred_region
      _
    $region5: #{gcn_lcg_forward.27} parent=1 // pred_fallthru
      _
    // Predicated region
    $region6: #{gcn_lcg_forward.27} parent=1 // pred_check
      _
    $region7: #{gcn_lcg_forward.27} parent=1 // pred_check_branch
      %17 = sbr.rel (0) target = $region9
    $region8: #{gcn_lcg_forward.27} parent=1 // pred_region
      _
    $region9: #{gcn_lcg_forward.27} parent=1 // pred_fallthru
      _
    // Predicated region
    $region10: #{gcn_lcg_forward.27} parent=1 // pred_check
      _
    $region11: #{gcn_lcg_forward.27} parent=1 // pred_check_branch
      %19 = sbr.rel (0) target = $region13
    $region12: #{gcn_lcg_forward.27} parent=1 // pred_region
      _
    $region13: #{gcn_lcg_forward.27} parent=1 // pred_fallthru
      _
    // Predicated region
    $region14: #{gcn_lcg_forward.27} parent=1 // pred_check
      _
    $region15: #{gcn_lcg_forward.27} parent=1 // pred_check_branch
      %21 = sbr.rel (0) target = $region17
    $region16: #{gcn_lcg_forward.27} parent=1 // pred_region
      _
    $region17: #{gcn_lcg_forward.27} parent=1 // pred_fallthru
      _
    // Predicated region
    $region18: #{gcn_lcg_forward.27} parent=1 // pred_check
      _
    $region19: #{gcn_lcg_forward.27} parent=1 // pred_check_branch
      %23 = sbr.rel (0) target = $region21
    $region20: #{gcn_lcg_forward.27} parent=1 // pred_region
      _
    $region21: #{gcn_lcg_forward.27} parent=1 // pred_fallthru
      _
    // Predicated region
    $region22: #{gcn_lcg_forward.27} parent=1 // pred_check
      _
    $region23: #{gcn_lcg_forward.27} parent=1 // pred_check_branch
      %25 = sbr.rel (0) target = $region25
    $region24: #{gcn_lcg_forward.27} parent=1 // pred_region
      _
    $region25: #{gcn_lcg_forward.27} parent=1 // pred_fallthru
      _
    // Predicated region
    $region26: #{gcn_lcg_forward.27} parent=1 // pred_check
      _
    $region27: #{gcn_lcg_forward.27} parent=1 // pred_check_branch
      %27 = sbr.rel (0) target = $region29
    $region28: #{gcn_lcg_forward.27} parent=1 // pred_region
      _
    $region29: #{gcn_lcg_forward.27} parent=1 // pred_fallthru
      _
    // Predicated region
    $region30: #{gcn_lcg_forward.27} parent=1 // pred_check
      _
    $region31: #{gcn_lcg_forward.27} parent=1 // pred_check_branch
      %29 = sbr.rel (0) target = $region33
    $region32: #{gcn_lcg_forward.27} parent=1 // pred_region
      _
    $region33: #{gcn_lcg_forward.27} parent=1 // pred_fallthru
      _
    %v30 = vld [vmem:[%s0] sm:$0xff]
    %v31 = vld [vmem:[%s4] sm:$0xff]
    %v32 = vld [vmem:[%s4 + $0x8] sm:$0xff]
    %v33 = vld [vmem:[%s4 + $0x10] sm:$0xff]
    %v34 = vld [vmem:[%s4 + $0x18] sm:$0xff]
    %v35 = vld [vmem:[%s1] sm:$0xff]
    %v36 = vld [vmem:[%s3] sm:$0xff]
    %38 = vset.pattern.permute.xlu0 0
    %39 = vperm.xlu0 %38, %v36
    %v40 = vpop.permute.xlu0 %39
    %v42 = vmul.f32 %v35, %v40
    %v43 = vld [vmem:[%s5] sm:$0xff]
    %v44 = vld [vmem:[%s5 + $0x8] sm:$0xff]
    %v45 = vld [vmem:[%s5 + $0x10] sm:$0xff]
    %v46 = vld [vmem:[%s5 + $0x18] sm:$0xff]
    %vm47 = vcmask 261120
    %v49 = vsel %vm47, %v42, 0
    %51 = vmatprep.subr.mxu0 0.0
    %52 = vmatpush1.msra.mxu0 %v43
    %53 = vmatprep.subr.mxu0 0.0
    %54 = vmatpush1.msra.mxu0 %v44
    %55 = vmatprep.subr.mxu0 0.0
    %56 = vmatpush1.msra.mxu0 %v45
    %57 = vmatprep.subr.mxu0 0.0
    %58 = vmatpush1.msra.mxu0 %v46
    %59 = vmatprep.subr.mxu0 0.0
    %60 = vmatpush1.msra.mxu0 0.0
    %61 = vmatprep.subr.mxu0 0.0
    %62 = vmatpush1.msra.mxu0 0.0
    %63 = vmatprep.subr.mxu0 0.0
    %64 = vmatpush1.msra.mxu0 0.0
    %65 = vmatprep.subr.mxu0 0.0
    %66 = vmatpush1.msra.mxu0 0.0
    %67 = vmatprep.subr.mxu0 0.0
    %68 = vmatpush1.msra.mxu0 0.0
    %69 = vmatprep.subr.mxu0 0.0
    %70 = vmatpush1.msra.mxu0 0.0
    %71 = vmatprep.subr.mxu0 0.0
    %72 = vmatpush1.msra.mxu0 0.0
    %73 = vmatprep.subr.mxu0 0.0
    %74 = vmatpush1.msra.mxu0 0.0
    %75 = vmatprep.subr.mxu0 0.0
    %76 = vmatpush1.msra.mxu0 0.0
    %77 = vmatprep.subr.mxu0 0.0
    %78 = vmatpush1.msra.mxu0 0.0
    %79 = vmatprep.subr.mxu0 0.0
    %80 = vmatpush1.msra.mxu0 0.0
    %81 = vmatprep.subr.mxu0 0.0
    %82 = vmatpush1.msra.mxu0 0.0
    %83 = vmatprep.subr.mxu0 0.0
    %84 = vmatpush1.msra.mxu0 0.0
    %85 = vmatprep.subr.mxu0 0.0
    %86 = vmatpush1.msra.mxu0 0.0
    %87 = vmatprep.subr.mxu0 0.0
    %88 = vmatpush1.msra.mxu0 0.0
    %89 = vmatprep.subr.mxu0 0.0
    %90 = vmatpush1.msra.mxu0 0.0
    %91 = vmatprep.subr.mxu0 0.0
    %92 = vmatpush1.msra.mxu0 0.0
    %93 = vmatprep.subr.mxu0 0.0
    %94 = vmatpush1.msra.mxu0 0.0
    %95 = vmatprep.subr.mxu0 0.0
    %96 = vmatpush1.msra.mxu0 0.0
    %97 = vmatprep.subr.mxu0 0.0
    %98 = vmatpush1.msra.mxu0 0.0
    %99 = vmatprep.subr.mxu0 0.0
    %100 = vmatpush1.msra.mxu0 0.0
    %101 = vmatprep.subr.mxu0 0.0
    %102 = vmatpush1.msra.mxu0 0.0
    %103 = vmatprep.subr.mxu0 0.0
    %104 = vmatpush1.msra.mxu0 0.0
    %105 = vmatprep.subr.mxu0 0.0
    %106 = vmatpush1.msra.mxu0 0.0
    %107 = vmatprep.subr.mxu0 0.0
    %108 = vmatpush1.msra.mxu0 0.0
    %109 = vmatprep.subr.mxu0 0.0
    %110 = vmatpush1.msra.mxu0 0.0
    %111 = vmatprep.subr.mxu0 0.0
    %112 = vmatpush1.msra.mxu0 0.0
    %113 = vmatprep.subr.mxu0 0.0
    %114 = vmatpush1.msra.mxu0 0.0
    %115 = vmatprep.mubr.f32.mxu0 0.0
    %116 = vmatmul.mubr.f32.gmra.mrb[0].mxu0 %v49
    %v117 = vpop.f32.mrb[0].mxu0
    %v118 = vadd.f32 0.0, %v117
    %v119 = vpop.f32.mrb[0].mxu0
    %120 = vdwg.mxu0
    %v122 = vsel %vm47, %v30, 0
    %124 = vmatprep.subr.mxu0 0.0
    %125 = vmatpush1.msra.mxu0 %v31
    %126 = vmatprep.subr.mxu0 0.0
    %127 = vmatpush1.msra.mxu0 %v32
    %128 = vmatprep.subr.mxu0 0.0
    %129 = vmatpush1.msra.mxu0 %v33
    %130 = vmatprep.subr.mxu0 0.0
    %131 = vmatpush1.msra.mxu0 %v34
    %132 = vmatprep.subr.mxu0 0.0
    %133 = vmatpush1.msra.mxu0 0.0
    %134 = vmatprep.subr.mxu0 0.0
    %135 = vmatpush1.msra.mxu0 0.0
    %136 = vmatprep.subr.mxu0 0.0
    %137 = vmatpush1.msra.mxu0 0.0
    %138 = vmatprep.subr.mxu0 0.0
    %139 = vmatpush1.msra.mxu0 0.0
    %140 = vmatprep.subr.mxu0 0.0
    %141 = vmatpush1.msra.mxu0 0.0
    %142 = vmatprep.subr.mxu0 0.0
    %143 = vmatpush1.msra.mxu0 0.0
    %144 = vmatprep.subr.mxu0 0.0
    %145 = vmatpush1.msra.mxu0 0.0
    %146 = vmatprep.subr.mxu0 0.0
    %147 = vmatpush1.msra.mxu0 0.0
    %148 = vmatprep.subr.mxu0 0.0
    %149 = vmatpush1.msra.mxu0 0.0
    %150 = vmatprep.subr.mxu0 0.0
    %151 = vmatpush1.msra.mxu0 0.0
    %152 = vmatprep.subr.mxu0 0.0
    %153 = vmatpush1.msra.mxu0 0.0
    %154 = vmatprep.subr.mxu0 0.0
    %155 = vmatpush1.msra.mxu0 0.0
    %156 = vmatprep.subr.mxu0 0.0
    %157 = vmatpush1.msra.mxu0 0.0
    %158 = vmatprep.subr.mxu0 0.0
    %159 = vmatpush1.msra.mxu0 0.0
    %160 = vmatprep.subr.mxu0 0.0
    %161 = vmatpush1.msra.mxu0 0.0
    %162 = vmatprep.subr.mxu0 0.0
    %163 = vmatpush1.msra.mxu0 0.0
    %164 = vmatprep.subr.mxu0 0.0
    %165 = vmatpush1.msra.mxu0 0.0
    %166 = vmatprep.subr.mxu0 0.0
    %167 = vmatpush1.msra.mxu0 0.0
    %168 = vmatprep.subr.mxu0 0.0
    %169 = vmatpush1.msra.mxu0 0.0
    %170 = vmatprep.subr.mxu0 0.0
    %171 = vmatpush1.msra.mxu0 0.0
    %172 = vmatprep.subr.mxu0 0.0
    %173 = vmatpush1.msra.mxu0 0.0
    %174 = vmatprep.subr.mxu0 0.0
    %175 = vmatpush1.msra.mxu0 0.0
    %176 = vmatprep.subr.mxu0 0.0
    %177 = vmatpush1.msra.mxu0 0.0
    %178 = vmatprep.subr.mxu0 0.0
    %179 = vmatpush1.msra.mxu0 0.0
    %180 = vmatprep.subr.mxu0 0.0
    %181 = vmatpush1.msra.mxu0 0.0
    %182 = vmatprep.subr.mxu0 0.0
    %183 = vmatpush1.msra.mxu0 0.0
    %184 = vmatprep.subr.mxu0 0.0
    %185 = vmatpush1.msra.mxu0 0.0
    %186 = vmatprep.subr.mxu0 0.0
    %187 = vmatpush1.msra.mxu0 0.0
    %188 = vmatprep.mubr.f32.mxu0 0.0
    %189 = vmatmul.mubr.f32.gmra.mrb[0].mxu0 %v122
    %v190 = vpop.f32.mrb[0].mxu0
    %v191 = vadd.f32 %v118, %v190
    %v192 = vpop.f32.mrb[0].mxu0
    %193 = vdwg.mxu0
    %v194 = vld [vmem:[%s2] sm:$0xff]
    %v195 = vld [vmem:[%s6] sm:$0xff]
    %v196 = vld [vmem:[%s6 + $0x8] sm:$0xff]
    %v197 = vld [vmem:[%s6 + $0x10] sm:$0xff]
    %v198 = vld [vmem:[%s6 + $0x18] sm:$0xff]
    %v200 = vsel %vm47, %v194, 0
    %202 = vmatprep.subr.mxu0 0.0
    %203 = vmatpush1.msra.mxu0 %v195
    %204 = vmatprep.subr.mxu0 0.0
    %205 = vmatpush1.msra.mxu0 %v196
    %206 = vmatprep.subr.mxu0 0.0
    %207 = vmatpush1.msra.mxu0 %v197
    %208 = vmatprep.subr.mxu0 0.0
    %209 = vmatpush1.msra.mxu0 %v198
    %210 = vmatprep.subr.mxu0 0.0
    %211 = vmatpush1.msra.mxu0 0.0
    %212 = vmatprep.subr.mxu0 0.0
    %213 = vmatpush1.msra.mxu0 0.0
    %214 = vmatprep.subr.mxu0 0.0
    %215 = vmatpush1.msra.mxu0 0.0
    %216 = vmatprep.subr.mxu0 0.0
    %217 = vmatpush1.msra.mxu0 0.0
    %218 = vmatprep.subr.mxu0 0.0
    %219 = vmatpush1.msra.mxu0 0.0
    %220 = vmatprep.subr.mxu0 0.0
    %221 = vmatpush1.msra.mxu0 0.0
    %222 = vmatprep.subr.mxu0 0.0
    %223 = vmatpush1.msra.mxu0 0.0
    %224 = vmatprep.subr.mxu0 0.0
    %225 = vmatpush1.msra.mxu0 0.0
    %226 = vmatprep.subr.mxu0 0.0
    %227 = vmatpush1.msra.mxu0 0.0
    %228 = vmatprep.subr.mxu0 0.0
    %229 = vmatpush1.msra.mxu0 0.0
    %230 = vmatprep.subr.mxu0 0.0
    %231 = vmatpush1.msra.mxu0 0.0
    %232 = vmatprep.subr.mxu0 0.0
    %233 = vmatpush1.msra.mxu0 0.0
    %234 = vmatprep.subr.mxu0 0.0
    %235 = vmatpush1.msra.mxu0 0.0
    %236 = vmatprep.subr.mxu0 0.0
    %237 = vmatpush1.msra.mxu0 0.0
    %238 = vmatprep.subr.mxu0 0.0
    %239 = vmatpush1.msra.mxu0 0.0
    %240 = vmatprep.subr.mxu0 0.0
    %241 = vmatpush1.msra.mxu0 0.0
    %242 = vmatprep.subr.mxu0 0.0
    %243 = vmatpush1.msra.mxu0 0.0
    %244 = vmatprep.subr.mxu0 0.0
    %245 = vmatpush1.msra.mxu0 0.0
    %246 = vmatprep.subr.mxu0 0.0
    %247 = vmatpush1.msra.mxu0 0.0
    %248 = vmatprep.subr.mxu0 0.0
    %249 = vmatpush1.msra.mxu0 0.0
    %250 = vmatprep.subr.mxu0 0.0
    %251 = vmatpush1.msra.mxu0 0.0
    %252 = vmatprep.subr.mxu0 0.0
    %253 = vmatpush1.msra.mxu0 0.0
    %254 = vmatprep.subr.mxu0 0.0
    %255 = vmatpush1.msra.mxu0 0.0
    %256 = vmatprep.subr.mxu0 0.0
    %257 = vmatpush1.msra.mxu0 0.0
    %258 = vmatprep.subr.mxu0 0.0
    %259 = vmatpush1.msra.mxu0 0.0
    %260 = vmatprep.subr.mxu0 0.0
    %261 = vmatpush1.msra.mxu0 0.0
    %262 = vmatprep.subr.mxu0 0.0
    %263 = vmatpush1.msra.mxu0 0.0
    %264 = vmatprep.subr.mxu0 0.0
    %265 = vmatpush1.msra.mxu0 0.0
    %266 = vmatprep.mubr.f32.mxu0 0.0
    %267 = vmatmul.mubr.f32.gmra.mrb[0].mxu0 %v200
    %v268 = vpop.f32.mrb[0].mxu0
    %v269 = vadd.f32 0.0, %v268
    %v270 = vpop.f32.mrb[0].mxu0
    %271 = vdwg.mxu0
    %v272 = vadd.f32 %v191, %v269
    %v273 = vld [vmem:[%s7] sm:$0x1]
    %v275 = vlaneseq
    %v276 = vshrl.u32 %v275, 7
    %v277 = vsub.s32 0, %v276
    %v278 = vrot.slane %v273, %v277
    %v280 = vadd.f32 %v272, %v278
    %281 = vst.msk [vmem:[#allocation2] sm:$0xff] %vm47, %v280
    // Predicated region
    $region34: #{gcn_lcg_forward.27} parent=1 // pred_check
      _
    $region35: #{gcn_lcg_forward.27} parent=1 // pred_check_branch
      %283 = sbr.rel (0) target = $region37
    $region36: #{gcn_lcg_forward.27} parent=1 // pred_region
      %s285 = ssub.s32 128, 128
      %286 = vsyncadd [#allocation3], %s285
      %s288 = sshll.u32 [#allocation2], 4
      %s289 = int_to_ptr.vmem [resolvable:$true] %s288
      %291 = dma.vmem_to_hbm [thread:$0]  %s289, 128, %s8, [#allocation3]
    $region37: #{gcn_lcg_forward.27} parent=1 // pred_fallthru
      _
    // Predicated region
    $region38: #{gcn_lcg_forward.27} parent=1 // pred_check
      _
    $region39: #{gcn_lcg_forward.27} parent=1 // pred_check_branch
      %293 = sbr.rel (0) target = $region41
    $region40: #{gcn_lcg_forward.27} parent=1 // pred_region
      %294 = dma.done [#allocation3], 128
    $region41: #{gcn_lcg_forward.27} parent=1 // pred_fallthru
      _
    %295 = vsyncpa [#allocation3], 1

</llo_original>
